<compile_context>
chip_gen: v7x
topology: tpu7x:2x2x1
jax: 0.10.0
libtpu: 0.0.40
codegen_flags: <defaults>
</compile_context>

<pallas_src>
import functools

import jax
import jax.numpy as jnp
from jax.experimental import pallas as pl
from jax.experimental.pallas import tpu as pltpu


def _device_kind():
    try:
        return jax.devices()[0].device_kind.lower()
    except Exception:
        return ""


def _tensorcores_per_chip():
    # v7x has 2 TensorCores per chip; v5e / v6e have 1.
    k = _device_kind()
    return 2 if ("v7" in k or "7x" in k) else 1


def _has_bf16_vpu():
    # v6e / v7x have bf16 VALUs; v5e and older do elementwise math in f32.
    k = _device_kind()
    return not any(tag in k for tag in ("v2", "v3", "v4", "v5"))


def _round_up(a, m):
    return ((a + m - 1) // m) * m


def critic_kernel(x_ref, w1_ref, b1_ref, w2_ref, b2_ref, w3_ref, b3_ref, o_ref,
                  *, bf16_elementwise):
    # x arrives f32 [tile_b, D] (PyTorch-natural layout; no wrapper cast pass).
    # Cast to bf16 at the MXU boundary only.
    x = x_ref[...].astype(jnp.bfloat16)

    # Layer 1: h1 = relu(W1 @ x^T + b1)  -> [fc1, tile_b]
    # dot_general contracts the minor dims of both operands, so the activation
    # tile needs no transpose and the result keeps batch on lanes.
    h1 = jax.lax.dot_general(
        w1_ref[...], x,
        dimension_numbers=(((1,), (1,)), ((), ())),
        preferred_element_type=jnp.float32)
    if bf16_elementwise:                      # v6e / v7x: bf16 VPU path
        h1 = jnp.maximum(h1.astype(jnp.bfloat16)
                         + b1_ref[...].astype(jnp.bfloat16), 0.0)
    else:                                     # v5e: f32 VPU path
        h1 = jnp.maximum(h1 + b1_ref[...], 0.0).astype(jnp.bfloat16)

    # Layer 2: h2 = relu(W2 @ h1 + b2)  -> [fc2, tile_b]
    h2 = jnp.dot(w2_ref[...], h1, preferred_element_type=jnp.float32)

    # Layer 3: Linear(fc2, 1) as VPU multiply + sublane reduce (keeps the MXU
    # free; the [1, tile_b] result is lane-dense -> unmasked full-lane store).
    if bf16_elementwise:
        h2 = jnp.maximum(h2.astype(jnp.bfloat16)
                         + b2_ref[...].astype(jnp.bfloat16), 0.0)
        v = jnp.sum((h2 * w3_ref[...]).astype(jnp.float32),
                    axis=0, keepdims=True)
    else:
        h2 = jnp.maximum(h2 + b2_ref[...], 0.0)
        v = jnp.sum(h2 * w3_ref[...].astype(jnp.float32),
                    axis=0, keepdims=True)

    o_ref[...] = (v + b3_ref[0]).astype(o_ref.dtype)


def critic_forward(x, params, *, max_tile_b=1024):
    """x: [B, input_dims] float32 -> value: [B, 1] float32."""
    w1, b1, w2, b2, w3, b3 = params
    B, D = x.shape

    # One grid step per TensorCore (per-step overhead dominates this kernel).
    # tile_b is capped so the f32 intermediates ([256, tile_b] x ~3) stay at a
    # few MiB of VMEM -> default scoped limits fit on every gen incl. v7x.
    n_cores = _tensorcores_per_chip()
    per_core = pl.cdiv(B, n_cores)
    if n_cores == 1 and per_core <= max_tile_b:
        tile_b, n_tiles = B, 1                       # block == full array, no pad
    else:
        tile_b = min(max_tile_b, _round_up(per_core, 128))
        n_tiles = _round_up(pl.cdiv(B, tile_b), n_cores)   # even split on v7x
    b_pad = n_tiles * tile_b
    if b_pad != B:
        x = jnp.pad(x, ((0, b_pad - B), (0, 0)))

    # Weights/biases: whole-array blocks with a constant index_map -> they stay
    # VMEM-resident across batch tiles; only x / output move per grid step.
    resident = lambda a: pl.BlockSpec(a.shape, lambda i: (0,) * a.ndim)

    kernel = functools.partial(critic_kernel, bf16_elementwise=_has_bf16_vpu())

    out = pl.pallas_call(
        kernel,
        grid=(n_tiles,),
        out_shape=jax.ShapeDtypeStruct((1, b_pad), jnp.float32),
        in_specs=[
            pl.BlockSpec((tile_b, D), lambda i: (i, 0)),        # x: batch-tiled
            resident(w1), resident(b1),
            resident(w2), resident(b2),
            resident(w3),
            pl.BlockSpec(memory_space=pltpu.MemorySpace.SMEM),  # b3 scalar
        ],
        out_specs=pl.BlockSpec((1, tile_b), lambda i: (0, i)),  # lane-dense row
        compiler_params=pltpu.CompilerParams(
            dimension_semantics=("parallel",)),
    )(x, w1, b1, w2, b2, w3, b3)

    # [1, B_pad] lane-dense row -> [B, 1] column (layout plumbing, outside kernel).
    return out.reshape(b_pad, 1)[:B]


def init_params(key, input_dims, fc1_dims=256, fc2_dims=256):
    """PyTorch-Linear-style init (uniform +-1/sqrt(fan_in)), [out, in] layout.

    Weights are bf16 (half the weight DMA, native bf16 MXU); biases stay f32
    (cast at the VPU only where the bf16 path is taken).  w3 is stored as a
    [fc2, 1] column for the in-kernel VPU reduce; b3 is a (1,) f32 SMEM scalar.
    """
    ks = jax.random.split(key, 6)

    def linear(kw, kb, fan_in, fan_out):
        bound = 1.0 / jnp.sqrt(fan_in)
        w = jax.random.uniform(kw, (fan_out, fan_in), jnp.float32, -bound, bound)
        b = jax.random.uniform(kb, (fan_out, 1), jnp.float32, -bound, bound)
        return w.astype(jnp.bfloat16), b

    w1, b1 = linear(ks[0], ks[1], input_dims, fc1_dims)
    w2, b2 = linear(ks[2], ks[3], fc1_dims, fc2_dims)
    w3_row, b3_col = linear(ks[4], ks[5], fc2_dims, 1)
    w3 = w3_row.T                                # [fc2, 1] bf16 column
    b3 = b3_col.reshape(1).astype(jnp.float32)   # (1,) f32 SMEM scalar
    return (w1, b1, w2, b2, w3, b3)


if __name__ == "__main__":
    key = jax.random.PRNGKey(0)
    k_x, k_p = jax.random.split(key)

    batch = 8          # small demo batch: one grid step per core, no padding
    input_dims = 32    # flattened preprocessed features fed to the critic

    x = jax.random.normal(k_x, (batch, input_dims), jnp.float32)
    params = init_params(k_p, input_dims)

    value = jax.block_until_ready(critic_forward(x, params))
    assert value.shape == (batch, 1)

    # Full-f32 reference (PyTorch semantics).  The kernel's bf16 weight /
    # activation quantization bounds the drift to ~1e-2 absolute.
    w1, b1, w2, b2, w3, b3 = params
    h1 = jnp.maximum(x @ w1.astype(jnp.float32).T + b1.reshape(1, -1), 0.0)
    h2 = jnp.maximum(h1 @ w2.astype(jnp.float32).T + b2.reshape(1, -1), 0.0)
    ref = h2 @ w3.astype(jnp.float32) + b3[0]

    err = float(jnp.max(jnp.abs(value - ref)))
    assert jnp.allclose(value, ref, atol=2e-2, rtol=2e-2), err

    print("KERNEL_OK")
</pallas_src>

<mosaic_0001>
module attributes {stable_mosaic.version = 11 : i64} {
  func.func @critic_kernel(%arg0: i32, %arg1: memref<8x32xf32, #tpu.memory_space<vmem>>, %arg2: memref<256x32xbf16, #tpu.memory_space<vmem>>, %arg3: memref<256x1xf32, #tpu.memory_space<vmem>>, %arg4: memref<256x256xbf16, #tpu.memory_space<vmem>>, %arg5: memref<256x1xf32, #tpu.memory_space<vmem>>, %arg6: memref<256x1xbf16, #tpu.memory_space<vmem>>, %arg7: memref<1xf32, #tpu.memory_space<smem>>, %arg8: memref<1x8xf32, #tpu.memory_space<vmem>>) attributes {dimension_semantics = [#tpu.dimension_semantics<parallel>], iteration_bounds = array<i64: 1>, scalar_prefetch = 0 : i64, scratch_operands = 0 : i64, tpu.core_type = #tpu.core_type<tc>, window_params = [{transform_indices = @transform_0, window_bounds = array<i64: 8, 32>}, {pipeline_mode = #tpu.pipeline_mode<synchronous>, transform_indices = @transform_1, window_bounds = array<i64: 256, 32>}, {pipeline_mode = #tpu.pipeline_mode<synchronous>, transform_indices = @transform_2, window_bounds = array<i64: 256, 1>}, {pipeline_mode = #tpu.pipeline_mode<synchronous>, transform_indices = @transform_3, window_bounds = array<i64: 256, 256>}, {pipeline_mode = #tpu.pipeline_mode<synchronous>, transform_indices = @transform_4, window_bounds = array<i64: 256, 1>}, {pipeline_mode = #tpu.pipeline_mode<synchronous>, transform_indices = @transform_5, window_bounds = array<i64: 256, 1>}, {transform_indices = @transform_6, window_bounds = array<i64: 1>}, {transform_indices = @transform_7, window_bounds = array<i64: 1, 8>}]} {
    %c0 = arith.constant 0 : index
    %c0_0 = arith.constant 0 : index
    %0 = vector.load %arg1[%c0, %c0_0] : memref<8x32xf32, #tpu.memory_space<vmem>>, vector<8x32xf32>
    %1 = arith.truncf %0 : vector<8x32xf32> to vector<8x32xbf16>
    %c0_1 = arith.constant 0 : index
    %c0_2 = arith.constant 0 : index
    %2 = vector.load %arg2[%c0_1, %c0_2] : memref<256x32xbf16, #tpu.memory_space<vmem>>, vector<256x32xbf16>
    %cst = arith.constant dense<0.000000e+00> : vector<256x8xf32>
    %3 = tpu.matmul %2, %1, %cst {dimension_numbers = #tpu.dot_dimension_numbers<[1], [1], [0], [0], [0, 0, 1, 0], [], []>} : vector<256x32xbf16>, vector<8x32xbf16>, vector<256x8xf32> -> vector<256x8xf32>
    %4 = arith.truncf %3 : vector<256x8xf32> to vector<256x8xbf16>
    %c0_3 = arith.constant 0 : index
    %c0_4 = arith.constant 0 : index
    %5 = vector.load %arg3[%c0_3, %c0_4] : memref<256x1xf32, #tpu.memory_space<vmem>>, vector<256x1xf32>
    %6 = arith.truncf %5 : vector<256x1xf32> to vector<256x1xbf16>
    %7 = vector.broadcast %6 : vector<256x1xbf16> to vector<256x8xbf16>
    %8 = arith.addf %4, %7 : vector<256x8xbf16>
    %cst_5 = arith.constant 0.000000e+00 : bf16
    %9 = vector.broadcast %cst_5 : bf16 to vector<256x8xbf16>
    %10 = arith.maximumf %8, %9 : vector<256x8xbf16>
    %c0_6 = arith.constant 0 : index
    %c0_7 = arith.constant 0 : index
    %11 = vector.load %arg4[%c0_6, %c0_7] : memref<256x256xbf16, #tpu.memory_space<vmem>>, vector<256x256xbf16>
    %cst_8 = arith.constant dense<0.000000e+00> : vector<256x8xf32>
    %12 = tpu.matmul %11, %10, %cst_8 {dimension_numbers = #tpu.dot_dimension_numbers<[1], [0], [0], [1], [0, 0, 1, 1], [], []>} : vector<256x256xbf16>, vector<256x8xbf16>, vector<256x8xf32> -> vector<256x8xf32>
    %13 = arith.truncf %12 : vector<256x8xf32> to vector<256x8xbf16>
    %c0_9 = arith.constant 0 : index
    %c0_10 = arith.constant 0 : index
    %14 = vector.load %arg5[%c0_9, %c0_10] : memref<256x1xf32, #tpu.memory_space<vmem>>, vector<256x1xf32>
    %15 = arith.truncf %14 : vector<256x1xf32> to vector<256x1xbf16>
    %16 = vector.broadcast %15 : vector<256x1xbf16> to vector<256x8xbf16>
    %17 = arith.addf %13, %16 : vector<256x8xbf16>
    %cst_11 = arith.constant 0.000000e+00 : bf16
    %18 = vector.broadcast %cst_11 : bf16 to vector<256x8xbf16>
    %19 = arith.maximumf %17, %18 : vector<256x8xbf16>
    %c0_12 = arith.constant 0 : index
    %c0_13 = arith.constant 0 : index
    %20 = vector.load %arg6[%c0_12, %c0_13] : memref<256x1xbf16, #tpu.memory_space<vmem>>, vector<256x1xbf16>
    %21 = vector.broadcast %20 : vector<256x1xbf16> to vector<256x8xbf16>
    %22 = arith.mulf %19, %21 : vector<256x8xbf16>
    %23 = arith.extf %22 : vector<256x8xbf16> to vector<256x8xf32>
    %cst_14 = arith.constant dense<0.000000e+00> : vector<8xf32>
    %24 = vector.multi_reduction <add>, %23, %cst_14 [0] : vector<256x8xf32> to vector<8xf32>
    %25 = vector.shape_cast %24 : vector<8xf32> to vector<1x8xf32>
    %c0_15 = arith.constant 0 : index
    %26 = memref.load %arg7[%c0_15] : memref<1xf32, #tpu.memory_space<smem>>
    %27 = vector.broadcast %26 : f32 to vector<1x8xf32>
    %28 = arith.addf %25, %27 : vector<1x8xf32>
    %c0_16 = arith.constant 0 : index
    %c0_17 = arith.constant 0 : index
    %29 = vector.load %arg8[%c0_16, %c0_17] : memref<1x8xf32, #tpu.memory_space<vmem>>, vector<1x8xf32>
    tpu.vector_store %arg8[%c0_16, %c0_17], %28 {strides = array<i32>} : memref<1x8xf32, #tpu.memory_space<vmem>>, vector<1x8xf32>,
    return
  }
  func.func @transform_0(%arg0: i32) -> (i32, i32) {
    %c0_i32 = arith.constant 0 : i32
    %c0_i32_0 = arith.constant 0 : i32
    return %arg0, %c0_i32 : i32, i32
  }
  func.func @transform_1(%arg0: i32) -> (i32, i32) {
    %c0_i32 = arith.constant 0 : i32
    %c0_i32_0 = arith.constant 0 : i32
    %c0_i32_1 = arith.constant 0 : i32
    return %c0_i32, %c0_i32_0 : i32, i32
  }
  func.func @transform_2(%arg0: i32) -> (i32, i32) {
    %c0_i32 = arith.constant 0 : i32
    %c0_i32_0 = arith.constant 0 : i32
    %c0_i32_1 = arith.constant 0 : i32
    return %c0_i32, %c0_i32_0 : i32, i32
  }
  func.func @transform_3(%arg0: i32) -> (i32, i32) {
    %c0_i32 = arith.constant 0 : i32
    %c0_i32_0 = arith.constant 0 : i32
    %c0_i32_1 = arith.constant 0 : i32
    return %c0_i32, %c0_i32_0 : i32, i32
  }
  func.func @transform_4(%arg0: i32) -> (i32, i32) {
    %c0_i32 = arith.constant 0 : i32
    %c0_i32_0 = arith.constant 0 : i32
    %c0_i32_1 = arith.constant 0 : i32
    return %c0_i32, %c0_i32_0 : i32, i32
  }
  func.func @transform_5(%arg0: i32) -> (i32, i32) {
    %c0_i32 = arith.constant 0 : i32
    %c0_i32_0 = arith.constant 0 : i32
    %c0_i32_1 = arith.constant 0 : i32
    return %c0_i32, %c0_i32_0 : i32, i32
  }
  func.func @transform_6(%arg0: i32) -> i32 {
    %c0_i32 = arith.constant 0 : i32
    %c0_i32_0 = arith.constant 0 : i32
    return %c0_i32 : i32
  }
  func.func @transform_7(%arg0: i32) -> (i32, i32) {
    %c0_i32 = arith.constant 0 : i32
    %c0_i32_0 = arith.constant 0 : i32
    return %c0_i32, %arg0 : i32, i32
  }
}

</mosaic_0001>

<llo_original>
// kernel: tpu_custom_call.1
$region0: #{tpu_custom_call.1}
  #allocation0 [shape = 'u32[]', space=smem, size = 0x4, offset = 0x4, fixed_abs, tag = 'smem constant byte address 0x4 - core index']
  #allocation1 [shape = 'u32[144,128]{1,0:T(1,128)}', space=vmem, size = 0x12000, scoped, tag = 'internal scratch']
  #allocation2 [shape = 'f32[1]{0:T(128)S(6)}', space=smem, size = 0x200, scoped, tag = 'scoped memory for tpu_custom_call.1']
  %s0 = inlined_call_operand.vmem [shape: f32[8,32], index: 0, kind: input, shape index: {}]
  %s1 = inlined_call_operand.vmem [shape: bf16[256,32], index: 1, kind: input, shape index: {}]
  %s2 = inlined_call_operand.vmem [shape: f32[256,1], index: 2, kind: input, shape index: {}]
  %s3 = inlined_call_operand.vmem [shape: bf16[256,256], index: 3, kind: input, shape index: {}]
  %s4 = inlined_call_operand.vmem [shape: f32[256,1], index: 4, kind: input, shape index: {}]
  %s5 = inlined_call_operand.vmem [shape: bf16[256,1], index: 5, kind: input, shape index: {}]
  %s6 = inlined_call_operand.<no memory space> [shape: f32[1], index: 6, kind: input, shape index: {}]
  %s7 = inlined_call_operand.hbm [shape: f32[1,8], index: 7, kind: output, shape index: {}]
  %s8 = sld [smem:[#allocation0]]
  $region38: #{tpu_custom_call.1} parent=0
    _
  %s10 = ssub.s32 1, %s8
  %s11 = scalar_select 0, %s10, %s8
  %12 = sst [smem:[#allocation2]] %s6
  $region1: #{tpu_custom_call.1} parent=0
    #allocation3 [shape = 'u8[512]{0}', space=vmem, size = 0x400, scoped, tag = 'output window, operand 0, single buffered']
    #allocation4 [shape = 's32[1]{0}', space=sflag, size = 0x4, scoped, tag = 'scoped memory for tpu_custom_call.1']
    %13 = vsyncpa [#allocation4], 0
    // Predicated region
    $region2: #{tpu_custom_call.1} parent=1 // pred_check
      _
    $region3: #{tpu_custom_call.1} parent=1 // pred_check_branch
      %15 = sbr.rel (0) target = $region5
    $region4: #{tpu_custom_call.1} parent=1 // pred_region
      _
    $region5: #{tpu_custom_call.1} parent=1 // pred_fallthru
      _
    // Predicated region
    $region6: #{tpu_custom_call.1} parent=1 // pred_check
      _
    $region7: #{tpu_custom_call.1} parent=1 // pred_check_branch
      %17 = sbr.rel (0) target = $region9
    $region8: #{tpu_custom_call.1} parent=1 // pred_region
      _
    $region9: #{tpu_custom_call.1} parent=1 // pred_fallthru
      _
    // Predicated region
    $region10: #{tpu_custom_call.1} parent=1 // pred_check
      _
    $region11: #{tpu_custom_call.1} parent=1 // pred_check_branch
      %19 = sbr.rel (0) target = $region13
    $region12: #{tpu_custom_call.1} parent=1 // pred_region
      _
    $region13: #{tpu_custom_call.1} parent=1 // pred_fallthru
      _
    // Predicated region
    $region14: #{tpu_custom_call.1} parent=1 // pred_check
      _
    $region15: #{tpu_custom_call.1} parent=1 // pred_check_branch
      %21 = sbr.rel (0) target = $region17
    $region16: #{tpu_custom_call.1} parent=1 // pred_region
      _
    $region17: #{tpu_custom_call.1} parent=1 // pred_fallthru
      _
    // Predicated region
    $region18: #{tpu_custom_call.1} parent=1 // pred_check
      _
    $region19: #{tpu_custom_call.1} parent=1 // pred_check_branch
      %23 = sbr.rel (0) target = $region21
    $region20: #{tpu_custom_call.1} parent=1 // pred_region
      _
    $region21: #{tpu_custom_call.1} parent=1 // pred_fallthru
      _
    // Predicated region
    $region22: #{tpu_custom_call.1} parent=1 // pred_check
      _
    $region23: #{tpu_custom_call.1} parent=1 // pred_check_branch
      %25 = sbr.rel (0) target = $region25
    $region24: #{tpu_custom_call.1} parent=1 // pred_region
      _
    $region25: #{tpu_custom_call.1} parent=1 // pred_fallthru
      _
    // Predicated region
    $region26: #{tpu_custom_call.1} parent=1 // pred_check
      _
    $region27: #{tpu_custom_call.1} parent=1 // pred_check_branch
      %27 = sbr.rel (0) target = $region29
    $region28: #{tpu_custom_call.1} parent=1 // pred_region
      _
    $region29: #{tpu_custom_call.1} parent=1 // pred_fallthru
      _
    %v29 = vld [vmem:[%s0] sm:$0xff]
    %v30 = vpack.c.bf16 %v29, %v29
    %v31 = vld [vmem:[%s1] sm:$0xf]
    %v32 = vld [vmem:[%s1 + $0x4] sm:$0xf]
    %v33 = vld [vmem:[%s1 + $0x8] sm:$0xf]
    %v34 = vld [vmem:[%s1 + $0xc] sm:$0xf]
    %v35 = vld [vmem:[%s1 + $0x10] sm:$0xf]
    %v36 = vld [vmem:[%s1 + $0x14] sm:$0xf]
    %v37 = vld [vmem:[%s1 + $0x18] sm:$0xf]
    %v38 = vld [vmem:[%s1 + $0x1c] sm:$0xf]
    %v39 = vld [vmem:[%s1 + $0x20] sm:$0xf]
    %v40 = vld [vmem:[%s1 + $0x24] sm:$0xf]
    %v41 = vld [vmem:[%s1 + $0x28] sm:$0xf]
    %v42 = vld [vmem:[%s1 + $0x2c] sm:$0xf]
    %v43 = vld [vmem:[%s1 + $0x30] sm:$0xf]
    %v44 = vld [vmem:[%s1 + $0x34] sm:$0xf]
    %v45 = vld [vmem:[%s1 + $0x38] sm:$0xf]
    %v46 = vld [vmem:[%s1 + $0x3c] sm:$0xf]
    %v47 = vld [vmem:[%s1 + $0x40] sm:$0xf]
    %v48 = vld [vmem:[%s1 + $0x44] sm:$0xf]
    %v49 = vld [vmem:[%s1 + $0x48] sm:$0xf]
    %v50 = vld [vmem:[%s1 + $0x4c] sm:$0xf]
    %v51 = vld [vmem:[%s1 + $0x50] sm:$0xf]
    %v52 = vld [vmem:[%s1 + $0x54] sm:$0xf]
    %v53 = vld [vmem:[%s1 + $0x58] sm:$0xf]
    %v54 = vld [vmem:[%s1 + $0x5c] sm:$0xf]
    %v55 = vld [vmem:[%s1 + $0x60] sm:$0xf]
    %v56 = vld [vmem:[%s1 + $0x64] sm:$0xf]
    %v57 = vld [vmem:[%s1 + $0x68] sm:$0xf]
    %v58 = vld [vmem:[%s1 + $0x6c] sm:$0xf]
    %v59 = vld [vmem:[%s1 + $0x70] sm:$0xf]
    %v60 = vld [vmem:[%s1 + $0x74] sm:$0xf]
    %v61 = vld [vmem:[%s1 + $0x78] sm:$0xf]
    %v62 = vld [vmem:[%s1 + $0x7c] sm:$0xf]
    %v95 = vunpack.c.l.b16 %v31
    %v96 = vunpack.c.l.b16 %v32
    %v97 = vunpack.c.l.b16 %v33
    %v98 = vunpack.c.l.b16 %v34
    %v99 = vunpack.c.l.b16 %v35
    %v100 = vunpack.c.l.b16 %v36
    %v101 = vunpack.c.l.b16 %v37
    %v102 = vunpack.c.l.b16 %v38
    %v103 = vunpack.c.l.b16 %v39
    %v104 = vunpack.c.l.b16 %v40
    %v105 = vunpack.c.l.b16 %v41
    %v106 = vunpack.c.l.b16 %v42
    %v107 = vunpack.c.l.b16 %v43
    %v108 = vunpack.c.l.b16 %v44
    %v109 = vunpack.c.l.b16 %v45
    %v110 = vunpack.c.l.b16 %v46
    %v111 = vunpack.c.l.b16 %v47
    %v112 = vunpack.c.l.b16 %v48
    %v113 = vunpack.c.l.b16 %v49
    %v114 = vunpack.c.l.b16 %v50
    %v115 = vunpack.c.l.b16 %v51
    %v116 = vunpack.c.l.b16 %v52
    %v117 = vunpack.c.l.b16 %v53
    %v118 = vunpack.c.l.b16 %v54
    %v119 = vunpack.c.l.b16 %v55
    %v120 = vunpack.c.l.b16 %v56
    %v121 = vunpack.c.l.b16 %v57
    %v122 = vunpack.c.l.b16 %v58
    %v123 = vunpack.c.l.b16 %v59
    %v124 = vunpack.c.l.b16 %v60
    %v125 = vunpack.c.l.b16 %v61
    %v126 = vunpack.c.l.b16 %v62
    %v127 = vpack.c.b16 %v96, %v95
    %v128 = vpack.c.b16 %v98, %v97
    %v129 = vpack.c.b16 %v100, %v99
    %v130 = vpack.c.b16 %v102, %v101
    %v131 = vpack.c.b16 %v104, %v103
    %v132 = vpack.c.b16 %v106, %v105
    %v133 = vpack.c.b16 %v108, %v107
    %v134 = vpack.c.b16 %v110, %v109
    %v135 = vpack.c.b16 %v112, %v111
    %v136 = vpack.c.b16 %v114, %v113
    %v137 = vpack.c.b16 %v116, %v115
    %v138 = vpack.c.b16 %v118, %v117
    %v139 = vpack.c.b16 %v120, %v119
    %v140 = vpack.c.b16 %v122, %v121
    %v141 = vpack.c.b16 %v124, %v123
    %v142 = vpack.c.b16 %v126, %v125
    %vm143 = vcmask 261120
    %v145 = vsel %vm143, %v127, 0
    %v148 = vsel %vm143, %v128, 0
    %v151 = vsel %vm143, %v129, 0
    %v154 = vsel %vm143, %v130, 0
    %v157 = vsel %vm143, %v131, 0
    %v160 = vsel %vm143, %v132, 0
    %v163 = vsel %vm143, %v133, 0
    %v166 = vsel %vm143, %v134, 0
    %v169 = vsel %vm143, %v135, 0
    %v172 = vsel %vm143, %v136, 0
    %v175 = vsel %vm143, %v137, 0
    %v178 = vsel %vm143, %v138, 0
    %v181 = vsel %vm143, %v139, 0
    %v184 = vsel %vm143, %v140, 0
    %v187 = vsel %vm143, %v141, 0
    %v190 = vsel %vm143, %v142, 0
    %v193 = vsel %vm143, %v30, 0
    %195 = vmatprep.subr.bf16.mxu0 0
    %196 = vmatpush1.bf16.xpose.msra.mxu0 %v193
    %197 = vmatprep.subr.bf16.mxu0 0
    %198 = vmatpush1.bf16.xpose.msra.mxu0 0
    %199 = vmatprep.subr.bf16.mxu0 0
    %200 = vmatpush1.bf16.xpose.msra.mxu0 0
    %201 = vmatprep.subr.bf16.mxu0 0
    %202 = vmatpush1.bf16.xpose.msra.mxu0 0
    %203 = vmatprep.subr.bf16.mxu0 0
    %204 = vmatpush1.bf16.xpose.msra.mxu0 0
    %205 = vmatprep.subr.bf16.mxu0 0
    %206 = vmatpush1.bf16.xpose.msra.mxu0 0
    %207 = vmatprep.subr.bf16.mxu0 0
    %208 = vmatpush1.bf16.xpose.msra.mxu0 0
    %209 = vmatprep.subr.bf16.mxu0 0
    %210 = vmatpush1.bf16.xpose.msra.mxu0 0
    %211 = vmatprep.subr.bf16.mxu0 0
    %212 = vmatpush1.bf16.xpose.msra.mxu0 0
    %213 = vmatprep.subr.bf16.mxu0 0
    %214 = vmatpush1.bf16.xpose.msra.mxu0 0
    %215 = vmatprep.subr.bf16.mxu0 0
    %216 = vmatpush1.bf16.xpose.msra.mxu0 0
    %217 = vmatprep.subr.bf16.mxu0 0
    %218 = vmatpush1.bf16.xpose.msra.mxu0 0
    %219 = vmatprep.subr.bf16.mxu0 0
    %220 = vmatpush1.bf16.xpose.msra.mxu0 0
    %221 = vmatprep.subr.bf16.mxu0 0
    %222 = vmatpush1.bf16.xpose.msra.mxu0 0
    %223 = vmatprep.subr.bf16.mxu0 0
    %224 = vmatpush1.bf16.xpose.msra.mxu0 0
    %225 = vmatprep.subr.bf16.mxu0 0
    %226 = vmatpush1.bf16.xpose.msra.mxu0 0
    %227 = vmatprep.mubr.bf16.mxu0 0
    %228 = vmatmul.mubr.bf16.gmra.mrb[0].mxu0 %v145
    %v229 = vpop.f32.mrb[0].mxu0
    %v230 = vadd.f32 0.0, %v229
    %v231 = vpop.f32.mrb[0].mxu0
    %v232 = vpop.f32.mrb[0].mxu0
    %v233 = vadd.f32 0.0, %v232
    %v234 = vpop.f32.mrb[0].mxu0
    %235 = vmatprep.mubr.bf16.mxu0 0
    %236 = vmatmul.mubr.bf16.gmra.mrb[0].mxu0 %v148
    %v237 = vpop.f32.mrb[0].mxu0
    %v238 = vadd.f32 0.0, %v237
    %v239 = vpop.f32.mrb[0].mxu0
    %v240 = vpop.f32.mrb[0].mxu0
    %v241 = vadd.f32 0.0, %v240
    %v242 = vpop.f32.mrb[0].mxu0
    %243 = vmatprep.mubr.bf16.mxu0 0
    %244 = vmatmul.mubr.bf16.gmra.mrb[0].mxu0 %v151
    %v245 = vpop.f32.mrb[0].mxu0
    %v246 = vadd.f32 0.0, %v245
    %v247 = vpop.f32.mrb[0].mxu0
    %v248 = vpop.f32.mrb[0].mxu0
    %v249 = vadd.f32 0.0, %v248
    %v250 = vpop.f32.mrb[0].mxu0
    %251 = vmatprep.mubr.bf16.mxu0 0
    %252 = vmatmul.mubr.bf16.gmra.mrb[0].mxu0 %v154
    %v253 = vpop.f32.mrb[0].mxu0
    %v254 = vadd.f32 0.0, %v253
    %v255 = vpop.f32.mrb[0].mxu0
    %v256 = vpop.f32.mrb[0].mxu0
    %v257 = vadd.f32 0.0, %v256
    %v258 = vpop.f32.mrb[0].mxu0
    %259 = vmatprep.mubr.bf16.mxu0 0
    %260 = vmatmul.mubr.bf16.gmra.mrb[0].mxu0 %v157
    %v261 = vpop.f32.mrb[0].mxu0
    %v262 = vadd.f32 0.0, %v261
    %v263 = vpop.f32.mrb[0].mxu0
    %v264 = vpop.f32.mrb[0].mxu0
    %v265 = vadd.f32 0.0, %v264
    %v266 = vpop.f32.mrb[0].mxu0
    %267 = vmatprep.mubr.bf16.mxu0 0
    %268 = vmatmul.mubr.bf16.gmra.mrb[0].mxu0 %v160
    %v269 = vpop.f32.mrb[0].mxu0
    %v270 = vadd.f32 0.0, %v269
    %v271 = vpop.f32.mrb[0].mxu0
    %v272 = vpop.f32.mrb[0].mxu0
    %v273 = vadd.f32 0.0, %v272
    %v274 = vpop.f32.mrb[0].mxu0
    %275 = vmatprep.mubr.bf16.mxu0 0
    %276 = vmatmul.mubr.bf16.gmra.mrb[0].mxu0 %v163
    %v277 = vpop.f32.mrb[0].mxu0
    %v278 = vadd.f32 0.0, %v277
    %v279 = vpop.f32.mrb[0].mxu0
    %v280 = vpop.f32.mrb[0].mxu0
    %v281 = vadd.f32 0.0, %v280
    %v282 = vpop.f32.mrb[0].mxu0
    %283 = vmatprep.mubr.bf16.mxu0 0
    %284 = vmatmul.mubr.bf16.gmra.mrb[0].mxu0 %v166
    %v285 = vpop.f32.mrb[0].mxu0
    %v286 = vadd.f32 0.0, %v285
    %v287 = vpop.f32.mrb[0].mxu0
    %v288 = vpop.f32.mrb[0].mxu0
    %v289 = vadd.f32 0.0, %v288
    %v290 = vpop.f32.mrb[0].mxu0
    %291 = vmatprep.mubr.bf16.mxu0 0
    %292 = vmatmul.mubr.bf16.gmra.mrb[0].mxu0 %v169
    %v293 = vpop.f32.mrb[0].mxu0
    %v294 = vadd.f32 0.0, %v293
    %v295 = vpop.f32.mrb[0].mxu0
    %v296 = vpop.f32.mrb[0].mxu0
    %v297 = vadd.f32 0.0, %v296
    %v298 = vpop.f32.mrb[0].mxu0
    %299 = vmatprep.mubr.bf16.mxu0 0
    %300 = vmatmul.mubr.bf16.gmra.mrb[0].mxu0 %v172
    %v301 = vpop.f32.mrb[0].mxu0
    %v302 = vadd.f32 0.0, %v301
    %v303 = vpop.f32.mrb[0].mxu0
    %v304 = vpop.f32.mrb[0].mxu0
    %v305 = vadd.f32 0.0, %v304
    %v306 = vpop.f32.mrb[0].mxu0
    %307 = vmatprep.mubr.bf16.mxu0 0
    %308 = vmatmul.mubr.bf16.gmra.mrb[0].mxu0 %v175
    %v309 = vpop.f32.mrb[0].mxu0
    %v310 = vadd.f32 0.0, %v309
    %v311 = vpop.f32.mrb[0].mxu0
    %v312 = vpop.f32.mrb[0].mxu0
    %v313 = vadd.f32 0.0, %v312
    %v314 = vpop.f32.mrb[0].mxu0
    %315 = vmatprep.mubr.bf16.mxu0 0
    %316 = vmatmul.mubr.bf16.gmra.mrb[0].mxu0 %v178
    %v317 = vpop.f32.mrb[0].mxu0
    %v318 = vadd.f32 0.0, %v317
    %v319 = vpop.f32.mrb[0].mxu0
    %v320 = vpop.f32.mrb[0].mxu0
    %v321 = vadd.f32 0.0, %v320
    %v322 = vpop.f32.mrb[0].mxu0
    %323 = vmatprep.mubr.bf16.mxu0 0
    %324 = vmatmul.mubr.bf16.gmra.mrb[0].mxu0 %v181
    %v325 = vpop.f32.mrb[0].mxu0
    %v326 = vadd.f32 0.0, %v325
    %v327 = vpop.f32.mrb[0].mxu0
    %v328 = vpop.f32.mrb[0].mxu0
    %v329 = vadd.f32 0.0, %v328
    %v330 = vpop.f32.mrb[0].mxu0
    %331 = vmatprep.mubr.bf16.mxu0 0
    %332 = vmatmul.mubr.bf16.gmra.mrb[0].mxu0 %v184
    %v333 = vpop.f32.mrb[0].mxu0
    %v334 = vadd.f32 0.0, %v333
    %v335 = vpop.f32.mrb[0].mxu0
    %v336 = vpop.f32.mrb[0].mxu0
    %v337 = vadd.f32 0.0, %v336
    %v338 = vpop.f32.mrb[0].mxu0
    %339 = vmatprep.mubr.bf16.mxu0 0
    %340 = vmatmul.mubr.bf16.gmra.mrb[0].mxu0 %v187
    %v341 = vpop.f32.mrb[0].mxu0
    %v342 = vadd.f32 0.0, %v341
    %v343 = vpop.f32.mrb[0].mxu0
    %v344 = vpop.f32.mrb[0].mxu0
    %v345 = vadd.f32 0.0, %v344
    %v346 = vpop.f32.mrb[0].mxu0
    %347 = vmatprep.mubr.bf16.mxu0 0
    %348 = vmatmul.mubr.bf16.gmra.mrb[0].mxu0 %v190
    %v349 = vpop.f32.mrb[0].mxu0
    %v350 = vadd.f32 0.0, %v349
    %v351 = vpop.f32.mrb[0].mxu0
    %v352 = vpop.f32.mrb[0].mxu0
    %v353 = vadd.f32 0.0, %v352
    %v354 = vpop.f32.mrb[0].mxu0
    %355 = vdwg.mxu0
    %v356 = vpack.c.bf16 %v233, %v230
    %v357 = vpack.c.bf16 %v241, %v238
    %v358 = vpack.c.bf16 %v249, %v246
    %v359 = vpack.c.bf16 %v257, %v254
    %v360 = vpack.c.bf16 %v265, %v262
    %v361 = vpack.c.bf16 %v273, %v270
    %v362 = vpack.c.bf16 %v281, %v278
    %v363 = vpack.c.bf16 %v289, %v286
    %v364 = vpack.c.bf16 %v297, %v294
    %v365 = vpack.c.bf16 %v305, %v302
    %v366 = vpack.c.bf16 %v313, %v310
    %v367 = vpack.c.bf16 %v321, %v318
    %v368 = vpack.c.bf16 %v329, %v326
    %v369 = vpack.c.bf16 %v337, %v334
    %v370 = vpack.c.bf16 %v345, %v342
    %v371 = vpack.c.bf16 %v353, %v350
    %v372 = vld [vmem:[%s2] sm:$0xff]
    %v373 = vld [vmem:[%s2 + $0x8] sm:$0xff]
    %v374 = vld [vmem:[%s2 + $0x10] sm:$0xff]
    %v375 = vld [vmem:[%s2 + $0x18] sm:$0xff]
    %v376 = vld [vmem:[%s2 + $0x20] sm:$0xff]
    %v377 = vld [vmem:[%s2 + $0x28] sm:$0xff]
    %v378 = vld [vmem:[%s2 + $0x30] sm:$0xff]
    %v379 = vld [vmem:[%s2 + $0x38] sm:$0xff]
    %v380 = vld [vmem:[%s2 + $0x40] sm:$0xff]
    %v381 = vld [vmem:[%s2 + $0x48] sm:$0xff]
    %v382 = vld [vmem:[%s2 + $0x50] sm:$0xff]
    %v383 = vld [vmem:[%s2 + $0x58] sm:$0xff]
    %v384 = vld [vmem:[%s2 + $0x60] sm:$0xff]
    %v385 = vld [vmem:[%s2 + $0x68] sm:$0xff]
    %v386 = vld [vmem:[%s2 + $0x70] sm:$0xff]
    %v387 = vld [vmem:[%s2 + $0x78] sm:$0xff]
    %v388 = vld [vmem:[%s2 + $0x80] sm:$0xff]
    %v389 = vld [vmem:[%s2 + $0x88] sm:$0xff]
    %v390 = vld [vmem:[%s2 + $0x90] sm:$0xff]
    %v391 = vld [vmem:[%s2 + $0x98] sm:$0xff]
    %v392 = vld [vmem:[%s2 + $0xa0] sm:$0xff]
    %v393 = vld [vmem:[%s2 + $0xa8] sm:$0xff]
    %v394 = vld [vmem:[%s2 + $0xb0] sm:$0xff]
    %v395 = vld [vmem:[%s2 + $0xb8] sm:$0xff]
    %v396 = vld [vmem:[%s2 + $0xc0] sm:$0xff]
    %v397 = vld [vmem:[%s2 + $0xc8] sm:$0xff]
    %v398 = vld [vmem:[%s2 + $0xd0] sm:$0xff]
    %v399 = vld [vmem:[%s2 + $0xd8] sm:$0xff]
    %v400 = vld [vmem:[%s2 + $0xe0] sm:$0xff]
    %v401 = vld [vmem:[%s2 + $0xe8] sm:$0xff]
    %v402 = vld [vmem:[%s2 + $0xf0] sm:$0xff]
    %v403 = vld [vmem:[%s2 + $0xf8] sm:$0xff]
    %v404 = vpack.c.bf16 %v373, %v372
    %v405 = vpack.c.bf16 %v375, %v374
    %v406 = vpack.c.bf16 %v377, %v376
    %v407 = vpack.c.bf16 %v379, %v378
    %v408 = vpack.c.bf16 %v381, %v380
    %v409 = vpack.c.bf16 %v383, %v382
    %v410 = vpack.c.bf16 %v385, %v384
    %v411 = vpack.c.bf16 %v387, %v386
    %v412 = vpack.c.bf16 %v389, %v388
    %v413 = vpack.c.bf16 %v391, %v390
    %v414 = vpack.c.bf16 %v393, %v392
    %v415 = vpack.c.bf16 %v395, %v394
    %v416 = vpack.c.bf16 %v397, %v396
    %v417 = vpack.c.bf16 %v399, %v398
    %v418 = vpack.c.bf16 %v401, %v400
    %v419 = vpack.c.bf16 %v403, %v402
    %421 = vset.pattern.permute.xlu0 0
    %422 = vperm.xlu0 %421, %v404
    %v423 = vpop.permute.xlu0 %422
    %426 = vset.pattern.permute.xlu0 0
    %427 = vperm.xlu0 %426, %v405
    %v428 = vpop.permute.xlu0 %427
    %431 = vset.pattern.permute.xlu0 0
    %432 = vperm.xlu0 %431, %v406
    %v433 = vpop.permute.xlu0 %432
    %436 = vset.pattern.permute.xlu0 0
    %437 = vperm.xlu0 %436, %v407
    %v438 = vpop.permute.xlu0 %437
    %441 = vset.pattern.permute.xlu0 0
    %442 = vperm.xlu0 %441, %v408
    %v443 = vpop.permute.xlu0 %442
    %446 = vset.pattern.permute.xlu0 0
    %447 = vperm.xlu0 %446, %v409
    %v448 = vpop.permute.xlu0 %447
    %451 = vset.pattern.permute.xlu0 0
    %452 = vperm.xlu0 %451, %v410
    %v453 = vpop.permute.xlu0 %452
    %456 = vset.pattern.permute.xlu0 0
    %457 = vperm.xlu0 %456, %v411
    %v458 = vpop.permute.xlu0 %457
    %461 = vset.pattern.permute.xlu0 0
    %462 = vperm.xlu0 %461, %v412
    %v463 = vpop.permute.xlu0 %462
    %466 = vset.pattern.permute.xlu0 0
    %467 = vperm.xlu0 %466, %v413
    %v468 = vpop.permute.xlu0 %467
    %471 = vset.pattern.permute.xlu0 0
    %472 = vperm.xlu0 %471, %v414
    %v473 = vpop.permute.xlu0 %472
    %476 = vset.pattern.permute.xlu0 0
    %477 = vperm.xlu0 %476, %v415
    %v478 = vpop.permute.xlu0 %477
    %481 = vset.pattern.permute.xlu0 0
    %482 = vperm.xlu0 %481, %v416
    %v483 = vpop.permute.xlu0 %482
    %486 = vset.pattern.permute.xlu0 0
    %487 = vperm.xlu0 %486, %v417
    %v488 = vpop.permute.xlu0 %487
    %491 = vset.pattern.permute.xlu0 0
    %492 = vperm.xlu0 %491, %v418
    %v493 = vpop.permute.xlu0 %492
    %496 = vset.pattern.permute.xlu0 0
    %497 = vperm.xlu0 %496, %v419
    %v498 = vpop.permute.xlu0 %497
    %v500 = vadd.bf16 %v356, %v423
    %v501 = vadd.bf16 %v357, %v428
    %v502 = vadd.bf16 %v358, %v433
    %v503 = vadd.bf16 %v359, %v438
    %v504 = vadd.bf16 %v360, %v443
    %v505 = vadd.bf16 %v361, %v448
    %v506 = vadd.bf16 %v362, %v453
    %v507 = vadd.bf16 %v363, %v458
    %v508 = vadd.bf16 %v364, %v463
    %v509 = vadd.bf16 %v365, %v468
    %v510 = vadd.bf16 %v366, %v473
    %v511 = vadd.bf16 %v367, %v478
    %v512 = vadd.bf16 %v368, %v483
    %v513 = vadd.bf16 %v369, %v488
    %v514 = vadd.bf16 %v370, %v493
    %v515 = vadd.bf16 %v371, %v498
    %v516 = vmax.bf16 %v500, 0
    %v517 = vmax.bf16 %v501, 0
    %v518 = vmax.bf16 %v502, 0
    %v519 = vmax.bf16 %v503, 0
    %v520 = vmax.bf16 %v504, 0
    %v521 = vmax.bf16 %v505, 0
    %v522 = vmax.bf16 %v506, 0
    %v523 = vmax.bf16 %v507, 0
    %v524 = vmax.bf16 %v508, 0
    %v525 = vmax.bf16 %v509, 0
    %v526 = vmax.bf16 %v510, 0
    %v527 = vmax.bf16 %v511, 0
    %v528 = vmax.bf16 %v512, 0
    %v529 = vmax.bf16 %v513, 0
    %v530 = vmax.bf16 %v514, 0
    %v531 = vmax.bf16 %v515, 0
    %v532 = vld [vmem:[%s3] sm:$0xff]
    %v533 = vld [vmem:[%s3 + $0x8] sm:$0xff]
    %v534 = vld [vmem:[%s3 + $0x10] sm:$0xff]
    %v535 = vld [vmem:[%s3 + $0x18] sm:$0xff]
    %v536 = vld [vmem:[%s3 + $0x20] sm:$0xff]
    %v537 = vld [vmem:[%s3 + $0x28] sm:$0xff]
    %v538 = vld [vmem:[%s3 + $0x30] sm:$0xff]
    %v539 = vld [vmem:[%s3 + $0x38] sm:$0xff]
    %v540 = vld [vmem:[%s3 + $0x40] sm:$0xff]
    %v541 = vld [vmem:[%s3 + $0x48] sm:$0xff]
    %v542 = vld [vmem:[%s3 + $0x50] sm:$0xff]
    %v543 = vld [vmem:[%s3 + $0x58] sm:$0xff]
    %v544 = vld [vmem:[%s3 + $0x60] sm:$0xff]
    %v545 = vld [vmem:[%s3 + $0x68] sm:$0xff]
    %v546 = vld [vmem:[%s3 + $0x70] sm:$0xff]
    %v547 = vld [vmem:[%s3 + $0x78] sm:$0xff]
    %v548 = vld [vmem:[%s3 + $0x80] sm:$0xff]
    %v549 = vld [vmem:[%s3 + $0x88] sm:$0xff]
    %v550 = vld [vmem:[%s3 + $0x90] sm:$0xff]
    %v551 = vld [vmem:[%s3 + $0x98] sm:$0xff]
    %v552 = vld [vmem:[%s3 + $0xa0] sm:$0xff]
    %v553 = vld [vmem:[%s3 + $0xa8] sm:$0xff]
    %v554 = vld [vmem:[%s3 + $0xb0] sm:$0xff]
    %v555 = vld [vmem:[%s3 + $0xb8] sm:$0xff]
    %v556 = vld [vmem:[%s3 + $0xc0] sm:$0xff]
    %v557 = vld [vmem:[%s3 + $0xc8] sm:$0xff]
    %v558 = vld [vmem:[%s3 + $0xd0] sm:$0xff]
    %v559 = vld [vmem:[%s3 + $0xd8] sm:$0xff]
    %v560 = vld [vmem:[%s3 + $0xe0] sm:$0xff]
    %v561 = vld [vmem:[%s3 + $0xe8] sm:$0xff]
    %v562 = vld [vmem:[%s3 + $0xf0] sm:$0xff]
    %v563 = vld [vmem:[%s3 + $0xf8] sm:$0xff]
    %v596 = vunpack.c.l.b16 %v532
    %v597 = vunpack.c.h.b16 %v532
    %v598 = vunpack.c.l.b16 %v533
    %v599 = vunpack.c.h.b16 %v533
    %v600 = vunpack.c.l.b16 %v534
    %v601 = vunpack.c.h.b16 %v534
    %v602 = vunpack.c.l.b16 %v535
    %v603 = vunpack.c.h.b16 %v535
    %v604 = vunpack.c.l.b16 %v536
    %v605 = vunpack.c.h.b16 %v536
    %v606 = vunpack.c.l.b16 %v537
    %v607 = vunpack.c.h.b16 %v537
    %v608 = vunpack.c.l.b16 %v538
    %v609 = vunpack.c.h.b16 %v538
    %v610 = vunpack.c.l.b16 %v539
    %v611 = vunpack.c.h.b16 %v539
    %v612 = vunpack.c.l.b16 %v540
    %v613 = vunpack.c.h.b16 %v540
    %v614 = vunpack.c.l.b16 %v541
    %v615 = vunpack.c.h.b16 %v541
    %v616 = vunpack.c.l.b16 %v542
    %v617 = vunpack.c.h.b16 %v542
    %v618 = vunpack.c.l.b16 %v543
    %v619 = vunpack.c.h.b16 %v543
    %v620 = vunpack.c.l.b16 %v544
    %v621 = vunpack.c.h.b16 %v544
    %v622 = vunpack.c.l.b16 %v545
    %v623 = vunpack.c.h.b16 %v545
    %v624 = vunpack.c.l.b16 %v546
    %v625 = vunpack.c.h.b16 %v546
    %v626 = vunpack.c.l.b16 %v547
    %v627 = vunpack.c.h.b16 %v547
    %v628 = vunpack.c.l.b16 %v548
    %v629 = vunpack.c.h.b16 %v548
    %v630 = vunpack.c.l.b16 %v549
    %v631 = vunpack.c.h.b16 %v549
    %v632 = vunpack.c.l.b16 %v550
    %v633 = vunpack.c.h.b16 %v550
    %v634 = vunpack.c.l.b16 %v551
    %v635 = vunpack.c.h.b16 %v551
    %v636 = vunpack.c.l.b16 %v552
    %v637 = vunpack.c.h.b16 %v552
    %v638 = vunpack.c.l.b16 %v553
    %v639 = vunpack.c.h.b16 %v553
    %v640 = vunpack.c.l.b16 %v554
    %v641 = vunpack.c.h.b16 %v554
    %v642 = vunpack.c.l.b16 %v555
    %v643 = vunpack.c.h.b16 %v555
    %v644 = vunpack.c.l.b16 %v556
    %v645 = vunpack.c.h.b16 %v556
    %v646 = vunpack.c.l.b16 %v557
    %v647 = vunpack.c.h.b16 %v557
    %v648 = vunpack.c.l.b16 %v558
    %v649 = vunpack.c.h.b16 %v558
    %v650 = vunpack.c.l.b16 %v559
    %v651 = vunpack.c.h.b16 %v559
    %v652 = vunpack.c.l.b16 %v560
    %v653 = vunpack.c.h.b16 %v560
    %v654 = vunpack.c.l.b16 %v561
    %v655 = vunpack.c.h.b16 %v561
    %v656 = vunpack.c.l.b16 %v562
    %v657 = vunpack.c.h.b16 %v562
    %v658 = vunpack.c.l.b16 %v563
    %v659 = vunpack.c.h.b16 %v563
    %v660 = vpack.c.b16 %v598, %v596
    %v661 = vpack.c.b16 %v599, %v597
    %v662 = vpack.c.b16 %v602, %v600
    %v663 = vpack.c.b16 %v603, %v601
    %v664 = vpack.c.b16 %v606, %v604
    %v665 = vpack.c.b16 %v607, %v605
    %v666 = vpack.c.b16 %v610, %v608
    %v667 = vpack.c.b16 %v611, %v609
    %v668 = vpack.c.b16 %v614, %v612
    %v669 = vpack.c.b16 %v615, %v613
    %v670 = vpack.c.b16 %v618, %v616
    %v671 = vpack.c.b16 %v619, %v617
    %v672 = vpack.c.b16 %v622, %v620
    %v673 = vpack.c.b16 %v623, %v621
    %v674 = vpack.c.b16 %v626, %v624
    %v675 = vpack.c.b16 %v627, %v625
    %v676 = vpack.c.b16 %v630, %v628
    %v677 = vpack.c.b16 %v631, %v629
    %v678 = vpack.c.b16 %v634, %v632
    %v679 = vpack.c.b16 %v635, %v633
    %v680 = vpack.c.b16 %v638, %v636
    %v681 = vpack.c.b16 %v639, %v637
    %v682 = vpack.c.b16 %v642, %v640
    %v683 = vpack.c.b16 %v643, %v641
    %v684 = vpack.c.b16 %v646, %v644
    %v685 = vpack.c.b16 %v647, %v645
    %v686 = vpack.c.b16 %v650, %v648
    %v687 = vpack.c.b16 %v651, %v649
    %v688 = vpack.c.b16 %v654, %v652
    %v689 = vpack.c.b16 %v655, %v653
    %v690 = vpack.c.b16 %v658, %v656
    %v691 = vpack.c.b16 %v659, %v657
    %724 = vmatprep.subr.bf16.mxu0 0
    %725 = vmatpush1.bf16.msra.mxu0 %v516
    %726 = vmatprep.subr.bf16.mxu0 0
    %727 = vmatpush1.bf16.msra.mxu0 %v517
    %728 = vmatprep.subr.bf16.mxu0 0
    %729 = vmatpush1.bf16.msra.mxu0 %v518
    %730 = vmatprep.subr.bf16.mxu0 0
    %731 = vmatpush1.bf16.msra.mxu0 %v519
    %732 = vmatprep.subr.bf16.mxu0 0
    %733 = vmatpush1.bf16.msra.mxu0 %v520
    %734 = vmatprep.subr.bf16.mxu0 0
    %735 = vmatpush1.bf16.msra.mxu0 %v521
    %736 = vmatprep.subr.bf16.mxu0 0
    %737 = vmatpush1.bf16.msra.mxu0 %v522
    %738 = vmatprep.subr.bf16.mxu0 0
    %739 = vmatpush1.bf16.msra.mxu0 %v523
    %740 = vmatprep.subr.bf16.mxu0 0
    %741 = vmatpush1.bf16.msra.mxu0 %v524
    %742 = vmatprep.subr.bf16.mxu0 0
    %743 = vmatpush1.bf16.msra.mxu0 %v525
    %744 = vmatprep.subr.bf16.mxu0 0
    %745 = vmatpush1.bf16.msra.mxu0 %v526
    %746 = vmatprep.subr.bf16.mxu0 0
    %747 = vmatpush1.bf16.msra.mxu0 %v527
    %748 = vmatprep.subr.bf16.mxu0 0
    %749 = vmatpush1.bf16.msra.mxu0 %v528
    %750 = vmatprep.subr.bf16.mxu0 0
    %751 = vmatpush1.bf16.msra.mxu0 %v529
    %752 = vmatprep.subr.bf16.mxu0 0
    %753 = vmatpush1.bf16.msra.mxu0 %v530
    %754 = vmatprep.subr.bf16.mxu0 0
    %755 = vmatpush1.bf16.msra.mxu0 %v531
    %756 = vmatprep.mubr.bf16.mxu0 %v661
    %757 = vmatmul.mubr.bf16.gmra.mrb[0].mxu0 %v660
    %v758 = vpop.f32.mrb[0].mxu0
    %v759 = vadd.f32 0.0, %v758
    %v760 = vpop.f32.mrb[0].mxu0
    %v761 = vpop.f32.mrb[0].mxu0
    %v762 = vadd.f32 0.0, %v761
    %v763 = vpop.f32.mrb[0].mxu0
    %764 = vmatprep.mubr.bf16.mxu0 %v663
    %765 = vmatmul.mubr.bf16.gmra.mrb[0].mxu0 %v662
    %v766 = vpop.f32.mrb[0].mxu0
    %v767 = vadd.f32 0.0, %v766
    %v768 = vpop.f32.mrb[0].mxu0
    %v769 = vpop.f32.mrb[0].mxu0
    %v770 = vadd.f32 0.0, %v769
    %v771 = vpop.f32.mrb[0].mxu0
    %772 = vmatprep.mubr.bf16.mxu0 %v665
    %773 = vmatmul.mubr.bf16.gmra.mrb[0].mxu0 %v664
    %v774 = vpop.f32.mrb[0].mxu0
    %v775 = vadd.f32 0.0, %v774
    %v776 = vpop.f32.mrb[0].mxu0
    %v777 = vpop.f32.mrb[0].mxu0
    %v778 = vadd.f32 0.0, %v777
    %v779 = vpop.f32.mrb[0].mxu0
    %780 = vmatprep.mubr.bf16.mxu0 %v667
    %781 = vmatmul.mubr.bf16.gmra.mrb[0].mxu0 %v666
    %v782 = vpop.f32.mrb[0].mxu0
    %v783 = vadd.f32 0.0, %v782
    %v784 = vpop.f32.mrb[0].mxu0
    %v785 = vpop.f32.mrb[0].mxu0
    %v786 = vadd.f32 0.0, %v785
    %v787 = vpop.f32.mrb[0].mxu0
    %788 = vmatprep.mubr.bf16.mxu0 %v669
    %789 = vmatmul.mubr.bf16.gmra.mrb[0].mxu0 %v668
    %v790 = vpop.f32.mrb[0].mxu0
    %v791 = vadd.f32 0.0, %v790
    %v792 = vpop.f32.mrb[0].mxu0
    %v793 = vpop.f32.mrb[0].mxu0
    %v794 = vadd.f32 0.0, %v793
    %v795 = vpop.f32.mrb[0].mxu0
    %796 = vmatprep.mubr.bf16.mxu0 %v671
    %797 = vmatmul.mubr.bf16.gmra.mrb[0].mxu0 %v670
    %v798 = vpop.f32.mrb[0].mxu0
    %v799 = vadd.f32 0.0, %v798
    %v800 = vpop.f32.mrb[0].mxu0
    %v801 = vpop.f32.mrb[0].mxu0
    %v802 = vadd.f32 0.0, %v801
    %v803 = vpop.f32.mrb[0].mxu0
    %804 = vmatprep.mubr.bf16.mxu0 %v673
    %805 = vmatmul.mubr.bf16.gmra.mrb[0].mxu0 %v672
    %v806 = vpop.f32.mrb[0].mxu0
    %v807 = vadd.f32 0.0, %v806
    %v808 = vpop.f32.mrb[0].mxu0
    %v809 = vpop.f32.mrb[0].mxu0
    %v810 = vadd.f32 0.0, %v809
    %v811 = vpop.f32.mrb[0].mxu0
    %812 = vmatprep.mubr.bf16.mxu0 %v675
    %813 = vmatmul.mubr.bf16.gmra.mrb[0].mxu0 %v674
    %v814 = vpop.f32.mrb[0].mxu0
    %v815 = vadd.f32 0.0, %v814
    %v816 = vpop.f32.mrb[0].mxu0
    %v817 = vpop.f32.mrb[0].mxu0
    %v818 = vadd.f32 0.0, %v817
    %v819 = vpop.f32.mrb[0].mxu0
    %820 = vmatprep.mubr.bf16.mxu0 %v677
    %821 = vmatmul.mubr.bf16.gmra.mrb[0].mxu0 %v676
    %v822 = vpop.f32.mrb[0].mxu0
    %v823 = vadd.f32 0.0, %v822
    %v824 = vpop.f32.mrb[0].mxu0
    %v825 = vpop.f32.mrb[0].mxu0
    %v826 = vadd.f32 0.0, %v825
    %v827 = vpop.f32.mrb[0].mxu0
    %828 = vmatprep.mubr.bf16.mxu0 %v679
    %829 = vmatmul.mubr.bf16.gmra.mrb[0].mxu0 %v678
    %v830 = vpop.f32.mrb[0].mxu0
    %v831 = vadd.f32 0.0, %v830
    %v832 = vpop.f32.mrb[0].mxu0
    %v833 = vpop.f32.mrb[0].mxu0
    %v834 = vadd.f32 0.0, %v833
    %v835 = vpop.f32.mrb[0].mxu0
    %836 = vmatprep.mubr.bf16.mxu0 %v681
    %837 = vmatmul.mubr.bf16.gmra.mrb[0].mxu0 %v680
    %v838 = vpop.f32.mrb[0].mxu0
    %v839 = vadd.f32 0.0, %v838
    %v840 = vpop.f32.mrb[0].mxu0
    %v841 = vpop.f32.mrb[0].mxu0
    %v842 = vadd.f32 0.0, %v841
    %v843 = vpop.f32.mrb[0].mxu0
    %844 = vmatprep.mubr.bf16.mxu0 %v683
    %845 = vmatmul.mubr.bf16.gmra.mrb[0].mxu0 %v682
    %v846 = vpop.f32.mrb[0].mxu0
    %v847 = vadd.f32 0.0, %v846
    %v848 = vpop.f32.mrb[0].mxu0
    %v849 = vpop.f32.mrb[0].mxu0
    %v850 = vadd.f32 0.0, %v849
    %v851 = vpop.f32.mrb[0].mxu0
    %852 = vmatprep.mubr.bf16.mxu0 %v685
    %853 = vmatmul.mubr.bf16.gmra.mrb[0].mxu0 %v684
    %v854 = vpop.f32.mrb[0].mxu0
    %v855 = vadd.f32 0.0, %v854
    %v856 = vpop.f32.mrb[0].mxu0
    %v857 = vpop.f32.mrb[0].mxu0
    %v858 = vadd.f32 0.0, %v857
    %v859 = vpop.f32.mrb[0].mxu0
    %860 = vmatprep.mubr.bf16.mxu0 %v687
    %861 = vmatmul.mubr.bf16.gmra.mrb[0].mxu0 %v686
    %v862 = vpop.f32.mrb[0].mxu0
    %v863 = vadd.f32 0.0, %v862
    %v864 = vpop.f32.mrb[0].mxu0
    %v865 = vpop.f32.mrb[0].mxu0
    %v866 = vadd.f32 0.0, %v865
    %v867 = vpop.f32.mrb[0].mxu0
    %868 = vmatprep.mubr.bf16.mxu0 %v689
    %869 = vmatmul.mubr.bf16.gmra.mrb[0].mxu0 %v688
    %v870 = vpop.f32.mrb[0].mxu0
    %v871 = vadd.f32 0.0, %v870
    %v872 = vpop.f32.mrb[0].mxu0
    %v873 = vpop.f32.mrb[0].mxu0
    %v874 = vadd.f32 0.0, %v873
    %v875 = vpop.f32.mrb[0].mxu0
    %876 = vmatprep.mubr.bf16.mxu0 %v691
    %877 = vmatmul.mubr.bf16.gmra.mrb[0].mxu0 %v690
    %v878 = vpop.f32.mrb[0].mxu0
    %v879 = vadd.f32 0.0, %v878
    %v880 = vpop.f32.mrb[0].mxu0
    %v881 = vpop.f32.mrb[0].mxu0
    %v882 = vadd.f32 0.0, %v881
    %v883 = vpop.f32.mrb[0].mxu0
    %884 = vdwg.mxu0
    %v885 = vpack.c.bf16 %v762, %v759
    %v886 = vpack.c.bf16 %v770, %v767
    %v887 = vpack.c.bf16 %v778, %v775
    %v888 = vpack.c.bf16 %v786, %v783
    %v889 = vpack.c.bf16 %v794, %v791
    %v890 = vpack.c.bf16 %v802, %v799
    %v891 = vpack.c.bf16 %v810, %v807
    %v892 = vpack.c.bf16 %v818, %v815
    %v893 = vpack.c.bf16 %v826, %v823
    %v894 = vpack.c.bf16 %v834, %v831
    %v895 = vpack.c.bf16 %v842, %v839
    %v896 = vpack.c.bf16 %v850, %v847
    %v897 = vpack.c.bf16 %v858, %v855
    %v898 = vpack.c.bf16 %v866, %v863
    %v899 = vpack.c.bf16 %v874, %v871
    %v900 = vpack.c.bf16 %v882, %v879
    %v901 = vld [vmem:[%s4] sm:$0xff]
    %v902 = vld [vmem:[%s4 + $0x8] sm:$0xff]
    %v903 = vld [vmem:[%s4 + $0x10] sm:$0xff]
    %v904 = vld [vmem:[%s4 + $0x18] sm:$0xff]
    %v905 = vld [vmem:[%s4 + $0x20] sm:$0xff]
    %v906 = vld [vmem:[%s4 + $0x28] sm:$0xff]
    %v907 = vld [vmem:[%s4 + $0x30] sm:$0xff]
    %v908 = vld [vmem:[%s4 + $0x38] sm:$0xff]
    %v909 = vld [vmem:[%s4 + $0x40] sm:$0xff]
    %v910 = vld [vmem:[%s4 + $0x48] sm:$0xff]
    %v911 = vld [vmem:[%s4 + $0x50] sm:$0xff]
    %v912 = vld [vmem:[%s4 + $0x58] sm:$0xff]
    %v913 = vld [vmem:[%s4 + $0x60] sm:$0xff]
    %v914 = vld [vmem:[%s4 + $0x68] sm:$0xff]
    %v915 = vld [vmem:[%s4 + $0x70] sm:$0xff]
    %v916 = vld [vmem:[%s4 + $0x78] sm:$0xff]
    %v917 = vld [vmem:[%s4 + $0x80] sm:$0xff]
    %v918 = vld [vmem:[%s4 + $0x88] sm:$0xff]
    %v919 = vld [vmem:[%s4 + $0x90] sm:$0xff]
    %v920 = vld [vmem:[%s4 + $0x98] sm:$0xff]
    %v921 = vld [vmem:[%s4 + $0xa0] sm:$0xff]
    %v922 = vld [vmem:[%s4 + $0xa8] sm:$0xff]
    %v923 = vld [vmem:[%s4 + $0xb0] sm:$0xff]
    %v924 = vld [vmem:[%s4 + $0xb8] sm:$0xff]
    %v925 = vld [vmem:[%s4 + $0xc0] sm:$0xff]
    %v926 = vld [vmem:[%s4 + $0xc8] sm:$0xff]
    %v927 = vld [vmem:[%s4 + $0xd0] sm:$0xff]
    %v928 = vld [vmem:[%s4 + $0xd8] sm:$0xff]
    %v929 = vld [vmem:[%s4 + $0xe0] sm:$0xff]
    %v930 = vld [vmem:[%s4 + $0xe8] sm:$0xff]
    %v931 = vld [vmem:[%s4 + $0xf0] sm:$0xff]
    %v932 = vld [vmem:[%s4 + $0xf8] sm:$0xff]
    %v933 = vpack.c.bf16 %v902, %v901
    %v934 = vpack.c.bf16 %v904, %v903
    %v935 = vpack.c.bf16 %v906, %v905
    %v936 = vpack.c.bf16 %v908, %v907
    %v937 = vpack.c.bf16 %v910, %v909
    %v938 = vpack.c.bf16 %v912, %v911
    %v939 = vpack.c.bf16 %v914, %v913
    %v940 = vpack.c.bf16 %v916, %v915
    %v941 = vpack.c.bf16 %v918, %v917
    %v942 = vpack.c.bf16 %v920, %v919
    %v943 = vpack.c.bf16 %v922, %v921
    %v944 = vpack.c.bf16 %v924, %v923
    %v945 = vpack.c.bf16 %v926, %v925
    %v946 = vpack.c.bf16 %v928, %v927
    %v947 = vpack.c.bf16 %v930, %v929
    %v948 = vpack.c.bf16 %v932, %v931
    %950 = vset.pattern.permute.xlu0 0
    %951 = vperm.xlu0 %950, %v933
    %v952 = vpop.permute.xlu0 %951
    %955 = vset.pattern.permute.xlu0 0
    %956 = vperm.xlu0 %955, %v934
    %v957 = vpop.permute.xlu0 %956
    %960 = vset.pattern.permute.xlu0 0
    %961 = vperm.xlu0 %960, %v935
    %v962 = vpop.permute.xlu0 %961
    %965 = vset.pattern.permute.xlu0 0
    %966 = vperm.xlu0 %965, %v936
    %v967 = vpop.permute.xlu0 %966
    %970 = vset.pattern.permute.xlu0 0
    %971 = vperm.xlu0 %970, %v937
    %v972 = vpop.permute.xlu0 %971
    %975 = vset.pattern.permute.xlu0 0
    %976 = vperm.xlu0 %975, %v938
    %v977 = vpop.permute.xlu0 %976
    %980 = vset.pattern.permute.xlu0 0
    %981 = vperm.xlu0 %980, %v939
    %v982 = vpop.permute.xlu0 %981
    %985 = vset.pattern.permute.xlu0 0
    %986 = vperm.xlu0 %985, %v940
    %v987 = vpop.permute.xlu0 %986
    %990 = vset.pattern.permute.xlu0 0
    %991 = vperm.xlu0 %990, %v941
    %v992 = vpop.permute.xlu0 %991
    %995 = vset.pattern.permute.xlu0 0
    %996 = vperm.xlu0 %995, %v942
    %v997 = vpop.permute.xlu0 %996
    %1000 = vset.pattern.permute.xlu0 0
    %1001 = vperm.xlu0 %1000, %v943
    %v1002 = vpop.permute.xlu0 %1001
    %1005 = vset.pattern.permute.xlu0 0
    %1006 = vperm.xlu0 %1005, %v944
    %v1007 = vpop.permute.xlu0 %1006
    %1010 = vset.pattern.permute.xlu0 0
    %1011 = vperm.xlu0 %1010, %v945
    %v1012 = vpop.permute.xlu0 %1011
    %1015 = vset.pattern.permute.xlu0 0
    %1016 = vperm.xlu0 %1015, %v946
    %v1017 = vpop.permute.xlu0 %1016
    %1020 = vset.pattern.permute.xlu0 0
    %1021 = vperm.xlu0 %1020, %v947
    %v1022 = vpop.permute.xlu0 %1021
    %1025 = vset.pattern.permute.xlu0 0
    %1026 = vperm.xlu0 %1025, %v948
    %v1027 = vpop.permute.xlu0 %1026
    %v1029 = vadd.bf16 %v885, %v952
    %v1030 = vadd.bf16 %v886, %v957
    %v1031 = vadd.bf16 %v887, %v962
    %v1032 = vadd.bf16 %v888, %v967
    %v1033 = vadd.bf16 %v889, %v972
    %v1034 = vadd.bf16 %v890, %v977
    %v1035 = vadd.bf16 %v891, %v982
    %v1036 = vadd.bf16 %v892, %v987
    %v1037 = vadd.bf16 %v893, %v992
    %v1038 = vadd.bf16 %v894, %v997
    %v1039 = vadd.bf16 %v895, %v1002
    %v1040 = vadd.bf16 %v896, %v1007
    %v1041 = vadd.bf16 %v897, %v1012
    %v1042 = vadd.bf16 %v898, %v1017
    %v1043 = vadd.bf16 %v899, %v1022
    %v1044 = vadd.bf16 %v900, %v1027
    %v1045 = vmax.bf16 %v1029, 0
    %v1046 = vmax.bf16 %v1030, 0
    %v1047 = vmax.bf16 %v1031, 0
    %v1048 = vmax.bf16 %v1032, 0
    %v1049 = vmax.bf16 %v1033, 0
    %v1050 = vmax.bf16 %v1034, 0
    %v1051 = vmax.bf16 %v1035, 0
    %v1052 = vmax.bf16 %v1036, 0
    %v1053 = vmax.bf16 %v1037, 0
    %v1054 = vmax.bf16 %v1038, 0
    %v1055 = vmax.bf16 %v1039, 0
    %v1056 = vmax.bf16 %v1040, 0
    %v1057 = vmax.bf16 %v1041, 0
    %v1058 = vmax.bf16 %v1042, 0
    %v1059 = vmax.bf16 %v1043, 0
    %v1060 = vmax.bf16 %v1044, 0
    %v1061 = vld [vmem:[%s5] sm:$0xf]
    %v1062 = vld [vmem:[%s5 + $0x4] sm:$0xf]
    %v1063 = vld [vmem:[%s5 + $0x8] sm:$0xf]
    %v1064 = vld [vmem:[%s5 + $0xc] sm:$0xf]
    %v1065 = vld [vmem:[%s5 + $0x10] sm:$0xf]
    %v1066 = vld [vmem:[%s5 + $0x14] sm:$0xf]
    %v1067 = vld [vmem:[%s5 + $0x18] sm:$0xf]
    %v1068 = vld [vmem:[%s5 + $0x1c] sm:$0xf]
    %v1069 = vld [vmem:[%s5 + $0x20] sm:$0xf]
    %v1070 = vld [vmem:[%s5 + $0x24] sm:$0xf]
    %v1071 = vld [vmem:[%s5 + $0x28] sm:$0xf]
    %v1072 = vld [vmem:[%s5 + $0x2c] sm:$0xf]
    %v1073 = vld [vmem:[%s5 + $0x30] sm:$0xf]
    %v1074 = vld [vmem:[%s5 + $0x34] sm:$0xf]
    %v1075 = vld [vmem:[%s5 + $0x38] sm:$0xf]
    %v1076 = vld [vmem:[%s5 + $0x3c] sm:$0xf]
    %v1077 = vld [vmem:[%s5 + $0x40] sm:$0xf]
    %v1078 = vld [vmem:[%s5 + $0x44] sm:$0xf]
    %v1079 = vld [vmem:[%s5 + $0x48] sm:$0xf]
    %v1080 = vld [vmem:[%s5 + $0x4c] sm:$0xf]
    %v1081 = vld [vmem:[%s5 + $0x50] sm:$0xf]
    %v1082 = vld [vmem:[%s5 + $0x54] sm:$0xf]
    %v1083 = vld [vmem:[%s5 + $0x58] sm:$0xf]
    %v1084 = vld [vmem:[%s5 + $0x5c] sm:$0xf]
    %v1085 = vld [vmem:[%s5 + $0x60] sm:$0xf]
    %v1086 = vld [vmem:[%s5 + $0x64] sm:$0xf]
    %v1087 = vld [vmem:[%s5 + $0x68] sm:$0xf]
    %v1088 = vld [vmem:[%s5 + $0x6c] sm:$0xf]
    %v1089 = vld [vmem:[%s5 + $0x70] sm:$0xf]
    %v1090 = vld [vmem:[%s5 + $0x74] sm:$0xf]
    %v1091 = vld [vmem:[%s5 + $0x78] sm:$0xf]
    %v1092 = vld [vmem:[%s5 + $0x7c] sm:$0xf]
    %1094 = vset.pattern.permute.xlu0 0
    %1095 = vperm.xlu0 %1094, %v1061
    %v1096 = vpop.permute.xlu0 %1095
    %v1099 = vunpack.c.l.s4 839922192
    %v1100 = vunpack.c.0.s8 %v1099
    %v1101 = vlaneseq
    %v1102 = vshrl.u32 %v1101, 7
    %v1103 = vsub.s32 %v1100, %v1102
    %v1104 = vrot.slane %v1096, %v1103
    %1106 = vset.pattern.permute.xlu0 0
    %1107 = vperm.xlu0 %1106, %v1062
    %v1108 = vpop.permute.xlu0 %1107
    %v1111 = vunpack.c.l.s4 839922192
    %v1112 = vunpack.c.0.s8 %v1111
    %v1113 = vlaneseq
    %v1114 = vshrl.u32 %v1113, 7
    %v1115 = vsub.s32 %v1112, %v1114
    %v1116 = vrot.slane %v1108, %v1115
    %1118 = vset.pattern.permute.xlu0 0
    %1119 = vperm.xlu0 %1118, %v1063
    %v1120 = vpop.permute.xlu0 %1119
    %v1123 = vunpack.c.l.s4 839922192
    %v1124 = vunpack.c.0.s8 %v1123
    %v1125 = vlaneseq
    %v1126 = vshrl.u32 %v1125, 7
    %v1127 = vsub.s32 %v1124, %v1126
    %v1128 = vrot.slane %v1120, %v1127
    %1130 = vset.pattern.permute.xlu0 0
    %1131 = vperm.xlu0 %1130, %v1064
    %v1132 = vpop.permute.xlu0 %1131
    %v1135 = vunpack.c.l.s4 839922192
    %v1136 = vunpack.c.0.s8 %v1135
    %v1137 = vlaneseq
    %v1138 = vshrl.u32 %v1137, 7
    %v1139 = vsub.s32 %v1136, %v1138
    %v1140 = vrot.slane %v1132, %v1139
    %1142 = vset.pattern.permute.xlu0 0
    %1143 = vperm.xlu0 %1142, %v1065
    %v1144 = vpop.permute.xlu0 %1143
    %v1147 = vunpack.c.l.s4 839922192
    %v1148 = vunpack.c.0.s8 %v1147
    %v1149 = vlaneseq
    %v1150 = vshrl.u32 %v1149, 7
    %v1151 = vsub.s32 %v1148, %v1150
    %v1152 = vrot.slane %v1144, %v1151
    %1154 = vset.pattern.permute.xlu0 0
    %1155 = vperm.xlu0 %1154, %v1066
    %v1156 = vpop.permute.xlu0 %1155
    %v1159 = vunpack.c.l.s4 839922192
    %v1160 = vunpack.c.0.s8 %v1159
    %v1161 = vlaneseq
    %v1162 = vshrl.u32 %v1161, 7
    %v1163 = vsub.s32 %v1160, %v1162
    %v1164 = vrot.slane %v1156, %v1163
    %1166 = vset.pattern.permute.xlu0 0
    %1167 = vperm.xlu0 %1166, %v1067
    %v1168 = vpop.permute.xlu0 %1167
    %v1171 = vunpack.c.l.s4 839922192
    %v1172 = vunpack.c.0.s8 %v1171
    %v1173 = vlaneseq
    %v1174 = vshrl.u32 %v1173, 7
    %v1175 = vsub.s32 %v1172, %v1174
    %v1176 = vrot.slane %v1168, %v1175
    %1178 = vset.pattern.permute.xlu0 0
    %1179 = vperm.xlu0 %1178, %v1068
    %v1180 = vpop.permute.xlu0 %1179
    %v1183 = vunpack.c.l.s4 839922192
    %v1184 = vunpack.c.0.s8 %v1183
    %v1185 = vlaneseq
    %v1186 = vshrl.u32 %v1185, 7
    %v1187 = vsub.s32 %v1184, %v1186
    %v1188 = vrot.slane %v1180, %v1187
    %1190 = vset.pattern.permute.xlu0 0
    %1191 = vperm.xlu0 %1190, %v1069
    %v1192 = vpop.permute.xlu0 %1191
    %v1195 = vunpack.c.l.s4 839922192
    %v1196 = vunpack.c.0.s8 %v1195
    %v1197 = vlaneseq
    %v1198 = vshrl.u32 %v1197, 7
    %v1199 = vsub.s32 %v1196, %v1198
    %v1200 = vrot.slane %v1192, %v1199
    %1202 = vset.pattern.permute.xlu0 0
    %1203 = vperm.xlu0 %1202, %v1070
    %v1204 = vpop.permute.xlu0 %1203
    %v1207 = vunpack.c.l.s4 839922192
    %v1208 = vunpack.c.0.s8 %v1207
    %v1209 = vlaneseq
    %v1210 = vshrl.u32 %v1209, 7
    %v1211 = vsub.s32 %v1208, %v1210
    %v1212 = vrot.slane %v1204, %v1211
    %1214 = vset.pattern.permute.xlu0 0
    %1215 = vperm.xlu0 %1214, %v1071
    %v1216 = vpop.permute.xlu0 %1215
    %v1219 = vunpack.c.l.s4 839922192
    %v1220 = vunpack.c.0.s8 %v1219
    %v1221 = vlaneseq
    %v1222 = vshrl.u32 %v1221, 7
    %v1223 = vsub.s32 %v1220, %v1222
    %v1224 = vrot.slane %v1216, %v1223
    %1226 = vset.pattern.permute.xlu0 0
    %1227 = vperm.xlu0 %1226, %v1072
    %v1228 = vpop.permute.xlu0 %1227
    %v1231 = vunpack.c.l.s4 839922192
    %v1232 = vunpack.c.0.s8 %v1231
    %v1233 = vlaneseq
    %v1234 = vshrl.u32 %v1233, 7
    %v1235 = vsub.s32 %v1232, %v1234
    %v1236 = vrot.slane %v1228, %v1235
    %1238 = vset.pattern.permute.xlu0 0
    %1239 = vperm.xlu0 %1238, %v1073
    %v1240 = vpop.permute.xlu0 %1239
    %v1243 = vunpack.c.l.s4 839922192
    %v1244 = vunpack.c.0.s8 %v1243
    %v1245 = vlaneseq
    %v1246 = vshrl.u32 %v1245, 7
    %v1247 = vsub.s32 %v1244, %v1246
    %v1248 = vrot.slane %v1240, %v1247
    %1250 = vset.pattern.permute.xlu0 0
    %1251 = vperm.xlu0 %1250, %v1074
    %v1252 = vpop.permute.xlu0 %1251
    %v1255 = vunpack.c.l.s4 839922192
    %v1256 = vunpack.c.0.s8 %v1255
    %v1257 = vlaneseq
    %v1258 = vshrl.u32 %v1257, 7
    %v1259 = vsub.s32 %v1256, %v1258
    %v1260 = vrot.slane %v1252, %v1259
    %1262 = vset.pattern.permute.xlu0 0
    %1263 = vperm.xlu0 %1262, %v1075
    %v1264 = vpop.permute.xlu0 %1263
    %v1267 = vunpack.c.l.s4 839922192
    %v1268 = vunpack.c.0.s8 %v1267
    %v1269 = vlaneseq
    %v1270 = vshrl.u32 %v1269, 7
    %v1271 = vsub.s32 %v1268, %v1270
    %v1272 = vrot.slane %v1264, %v1271
    %1274 = vset.pattern.permute.xlu0 0
    %1275 = vperm.xlu0 %1274, %v1076
    %v1276 = vpop.permute.xlu0 %1275
    %v1279 = vunpack.c.l.s4 839922192
    %v1280 = vunpack.c.0.s8 %v1279
    %v1281 = vlaneseq
    %v1282 = vshrl.u32 %v1281, 7
    %v1283 = vsub.s32 %v1280, %v1282
    %v1284 = vrot.slane %v1276, %v1283
    %1286 = vset.pattern.permute.xlu0 0
    %1287 = vperm.xlu0 %1286, %v1077
    %v1288 = vpop.permute.xlu0 %1287
    %v1291 = vunpack.c.l.s4 839922192
    %v1292 = vunpack.c.0.s8 %v1291
    %v1293 = vlaneseq
    %v1294 = vshrl.u32 %v1293, 7
    %v1295 = vsub.s32 %v1292, %v1294
    %v1296 = vrot.slane %v1288, %v1295
    %1298 = vset.pattern.permute.xlu0 0
    %1299 = vperm.xlu0 %1298, %v1078
    %v1300 = vpop.permute.xlu0 %1299
    %v1303 = vunpack.c.l.s4 839922192
    %v1304 = vunpack.c.0.s8 %v1303
    %v1305 = vlaneseq
    %v1306 = vshrl.u32 %v1305, 7
    %v1307 = vsub.s32 %v1304, %v1306
    %v1308 = vrot.slane %v1300, %v1307
    %1310 = vset.pattern.permute.xlu0 0
    %1311 = vperm.xlu0 %1310, %v1079
    %v1312 = vpop.permute.xlu0 %1311
    %v1315 = vunpack.c.l.s4 839922192
    %v1316 = vunpack.c.0.s8 %v1315
    %v1317 = vlaneseq
    %v1318 = vshrl.u32 %v1317, 7
    %v1319 = vsub.s32 %v1316, %v1318
    %v1320 = vrot.slane %v1312, %v1319
    %1322 = vset.pattern.permute.xlu0 0
    %1323 = vperm.xlu0 %1322, %v1080
    %v1324 = vpop.permute.xlu0 %1323
    %v1327 = vunpack.c.l.s4 839922192
    %v1328 = vunpack.c.0.s8 %v1327
    %v1329 = vlaneseq
    %v1330 = vshrl.u32 %v1329, 7
    %v1331 = vsub.s32 %v1328, %v1330
    %v1332 = vrot.slane %v1324, %v1331
    %1334 = vset.pattern.permute.xlu0 0
    %1335 = vperm.xlu0 %1334, %v1081
    %v1336 = vpop.permute.xlu0 %1335
    %v1339 = vunpack.c.l.s4 839922192
    %v1340 = vunpack.c.0.s8 %v1339
    %v1341 = vlaneseq
    %v1342 = vshrl.u32 %v1341, 7
    %v1343 = vsub.s32 %v1340, %v1342
    %v1344 = vrot.slane %v1336, %v1343
    %1346 = vset.pattern.permute.xlu0 0
    %1347 = vperm.xlu0 %1346, %v1082
    %v1348 = vpop.permute.xlu0 %1347
    %v1351 = vunpack.c.l.s4 839922192
    %v1352 = vunpack.c.0.s8 %v1351
    %v1353 = vlaneseq
    %v1354 = vshrl.u32 %v1353, 7
    %v1355 = vsub.s32 %v1352, %v1354
    %v1356 = vrot.slane %v1348, %v1355
    %1358 = vset.pattern.permute.xlu0 0
    %1359 = vperm.xlu0 %1358, %v1083
    %v1360 = vpop.permute.xlu0 %1359
    %v1363 = vunpack.c.l.s4 839922192
    %v1364 = vunpack.c.0.s8 %v1363
    %v1365 = vlaneseq
    %v1366 = vshrl.u32 %v1365, 7
    %v1367 = vsub.s32 %v1364, %v1366
    %v1368 = vrot.slane %v1360, %v1367
    %1370 = vset.pattern.permute.xlu0 0
    %1371 = vperm.xlu0 %1370, %v1084
    %v1372 = vpop.permute.xlu0 %1371
    %v1375 = vunpack.c.l.s4 839922192
    %v1376 = vunpack.c.0.s8 %v1375
    %v1377 = vlaneseq
    %v1378 = vshrl.u32 %v1377, 7
    %v1379 = vsub.s32 %v1376, %v1378
    %v1380 = vrot.slane %v1372, %v1379
    %1382 = vset.pattern.permute.xlu0 0
    %1383 = vperm.xlu0 %1382, %v1085
    %v1384 = vpop.permute.xlu0 %1383
    %v1387 = vunpack.c.l.s4 839922192
    %v1388 = vunpack.c.0.s8 %v1387
    %v1389 = vlaneseq
    %v1390 = vshrl.u32 %v1389, 7
    %v1391 = vsub.s32 %v1388, %v1390
    %v1392 = vrot.slane %v1384, %v1391
    %1394 = vset.pattern.permute.xlu0 0
    %1395 = vperm.xlu0 %1394, %v1086
    %v1396 = vpop.permute.xlu0 %1395
    %v1399 = vunpack.c.l.s4 839922192
    %v1400 = vunpack.c.0.s8 %v1399
    %v1401 = vlaneseq
    %v1402 = vshrl.u32 %v1401, 7
    %v1403 = vsub.s32 %v1400, %v1402
    %v1404 = vrot.slane %v1396, %v1403
    %1406 = vset.pattern.permute.xlu0 0
    %1407 = vperm.xlu0 %1406, %v1087
    %v1408 = vpop.permute.xlu0 %1407
    %v1411 = vunpack.c.l.s4 839922192
    %v1412 = vunpack.c.0.s8 %v1411
    %v1413 = vlaneseq
    %v1414 = vshrl.u32 %v1413, 7
    %v1415 = vsub.s32 %v1412, %v1414
    %v1416 = vrot.slane %v1408, %v1415
    %1418 = vset.pattern.permute.xlu0 0
    %1419 = vperm.xlu0 %1418, %v1088
    %v1420 = vpop.permute.xlu0 %1419
    %v1423 = vunpack.c.l.s4 839922192
    %v1424 = vunpack.c.0.s8 %v1423
    %v1425 = vlaneseq
    %v1426 = vshrl.u32 %v1425, 7
    %v1427 = vsub.s32 %v1424, %v1426
    %v1428 = vrot.slane %v1420, %v1427
    %1430 = vset.pattern.permute.xlu0 0
    %1431 = vperm.xlu0 %1430, %v1089
    %v1432 = vpop.permute.xlu0 %1431
    %v1435 = vunpack.c.l.s4 839922192
    %v1436 = vunpack.c.0.s8 %v1435
    %v1437 = vlaneseq
    %v1438 = vshrl.u32 %v1437, 7
    %v1439 = vsub.s32 %v1436, %v1438
    %v1440 = vrot.slane %v1432, %v1439
    %1442 = vset.pattern.permute.xlu0 0
    %1443 = vperm.xlu0 %1442, %v1090
    %v1444 = vpop.permute.xlu0 %1443
    %v1447 = vunpack.c.l.s4 839922192
    %v1448 = vunpack.c.0.s8 %v1447
    %v1449 = vlaneseq
    %v1450 = vshrl.u32 %v1449, 7
    %v1451 = vsub.s32 %v1448, %v1450
    %v1452 = vrot.slane %v1444, %v1451
    %1454 = vset.pattern.permute.xlu0 0
    %1455 = vperm.xlu0 %1454, %v1091
    %v1456 = vpop.permute.xlu0 %1455
    %v1459 = vunpack.c.l.s4 839922192
    %v1460 = vunpack.c.0.s8 %v1459
    %v1461 = vlaneseq
    %v1462 = vshrl.u32 %v1461, 7
    %v1463 = vsub.s32 %v1460, %v1462
    %v1464 = vrot.slane %v1456, %v1463
    %1466 = vset.pattern.permute.xlu0 0
    %1467 = vperm.xlu0 %1466, %v1092
    %v1468 = vpop.permute.xlu0 %1467
    %v1471 = vunpack.c.l.s4 839922192
    %v1472 = vunpack.c.0.s8 %v1471
    %v1473 = vlaneseq
    %v1474 = vshrl.u32 %v1473, 7
    %v1475 = vsub.s32 %v1472, %v1474
    %v1476 = vrot.slane %v1468, %v1475
    %v1509 = vunpack.c.l.b16 %v1104
    %v1510 = vunpack.c.l.b16 %v1116
    %v1511 = vunpack.c.l.b16 %v1128
    %v1512 = vunpack.c.l.b16 %v1140
    %v1513 = vunpack.c.l.b16 %v1152
    %v1514 = vunpack.c.l.b16 %v1164
    %v1515 = vunpack.c.l.b16 %v1176
    %v1516 = vunpack.c.l.b16 %v1188
    %v1517 = vunpack.c.l.b16 %v1200
    %v1518 = vunpack.c.l.b16 %v1212
    %v1519 = vunpack.c.l.b16 %v1224
    %v1520 = vunpack.c.l.b16 %v1236
    %v1521 = vunpack.c.l.b16 %v1248
    %v1522 = vunpack.c.l.b16 %v1260
    %v1523 = vunpack.c.l.b16 %v1272
    %v1524 = vunpack.c.l.b16 %v1284
    %v1525 = vunpack.c.l.b16 %v1296
    %v1526 = vunpack.c.l.b16 %v1308
    %v1527 = vunpack.c.l.b16 %v1320
    %v1528 = vunpack.c.l.b16 %v1332
    %v1529 = vunpack.c.l.b16 %v1344
    %v1530 = vunpack.c.l.b16 %v1356
    %v1531 = vunpack.c.l.b16 %v1368
    %v1532 = vunpack.c.l.b16 %v1380
    %v1533 = vunpack.c.l.b16 %v1392
    %v1534 = vunpack.c.l.b16 %v1404
    %v1535 = vunpack.c.l.b16 %v1416
    %v1536 = vunpack.c.l.b16 %v1428
    %v1537 = vunpack.c.l.b16 %v1440
    %v1538 = vunpack.c.l.b16 %v1452
    %v1539 = vunpack.c.l.b16 %v1464
    %v1540 = vunpack.c.l.b16 %v1476
    %v1541 = vpack.c.b16 %v1510, %v1509
    %v1542 = vpack.c.b16 %v1512, %v1511
    %v1543 = vpack.c.b16 %v1514, %v1513
    %v1544 = vpack.c.b16 %v1516, %v1515
    %v1545 = vpack.c.b16 %v1518, %v1517
    %v1546 = vpack.c.b16 %v1520, %v1519
    %v1547 = vpack.c.b16 %v1522, %v1521
    %v1548 = vpack.c.b16 %v1524, %v1523
    %v1549 = vpack.c.b16 %v1526, %v1525
    %v1550 = vpack.c.b16 %v1528, %v1527
    %v1551 = vpack.c.b16 %v1530, %v1529
    %v1552 = vpack.c.b16 %v1532, %v1531
    %v1553 = vpack.c.b16 %v1534, %v1533
    %v1554 = vpack.c.b16 %v1536, %v1535
    %v1555 = vpack.c.b16 %v1538, %v1537
    %v1556 = vpack.c.b16 %v1540, %v1539
    %v1573 = vmul.bf16 %v1045, %v1541
    %v1574 = vmul.bf16 %v1046, %v1542
    %v1575 = vmul.bf16 %v1047, %v1543
    %v1576 = vmul.bf16 %v1048, %v1544
    %v1577 = vmul.bf16 %v1049, %v1545
    %v1578 = vmul.bf16 %v1050, %v1546
    %v1579 = vmul.bf16 %v1051, %v1547
    %v1580 = vmul.bf16 %v1052, %v1548
    %v1581 = vmul.bf16 %v1053, %v1549
    %v1582 = vmul.bf16 %v1054, %v1550
    %v1583 = vmul.bf16 %v1055, %v1551
    %v1584 = vmul.bf16 %v1056, %v1552
    %v1585 = vmul.bf16 %v1057, %v1553
    %v1586 = vmul.bf16 %v1058, %v1554
    %v1587 = vmul.bf16 %v1059, %v1555
    %v1588 = vmul.bf16 %v1060, %v1556
    %v1589 = vunpack.c.l.bf16 %v1573
    %v1590 = vunpack.c.h.bf16 %v1573
    %v1591 = vunpack.c.l.bf16 %v1574
    %v1592 = vunpack.c.h.bf16 %v1574
    %v1593 = vunpack.c.l.bf16 %v1575
    %v1594 = vunpack.c.h.bf16 %v1575
    %v1595 = vunpack.c.l.bf16 %v1576
    %v1596 = vunpack.c.h.bf16 %v1576
    %v1597 = vunpack.c.l.bf16 %v1577
    %v1598 = vunpack.c.h.bf16 %v1577
    %v1599 = vunpack.c.l.bf16 %v1578
    %v1600 = vunpack.c.h.bf16 %v1578
    %v1601 = vunpack.c.l.bf16 %v1579
    %v1602 = vunpack.c.h.bf16 %v1579
    %v1603 = vunpack.c.l.bf16 %v1580
    %v1604 = vunpack.c.h.bf16 %v1580
    %v1605 = vunpack.c.l.bf16 %v1581
    %v1606 = vunpack.c.h.bf16 %v1581
    %v1607 = vunpack.c.l.bf16 %v1582
    %v1608 = vunpack.c.h.bf16 %v1582
    %v1609 = vunpack.c.l.bf16 %v1583
    %v1610 = vunpack.c.h.bf16 %v1583
    %v1611 = vunpack.c.l.bf16 %v1584
    %v1612 = vunpack.c.h.bf16 %v1584
    %v1613 = vunpack.c.l.bf16 %v1585
    %v1614 = vunpack.c.h.bf16 %v1585
    %v1615 = vunpack.c.l.bf16 %v1586
    %v1616 = vunpack.c.h.bf16 %v1586
    %v1617 = vunpack.c.l.bf16 %v1587
    %v1618 = vunpack.c.h.bf16 %v1587
    %v1619 = vunpack.c.l.bf16 %v1588
    %v1620 = vunpack.c.h.bf16 %v1588
    %vm1621 = vcmask 64512
    %v1622 = vsel %vm1621, %v1589, 0.0
    %v1623 = vsel %vm1621, %v1590, 0.0
    %v1624 = vadd.f32 %v1622, %v1623
    %v1625 = vsel %vm1621, %v1591, 0.0
    %v1626 = vadd.f32 %v1624, %v1625
    %v1627 = vsel %vm1621, %v1592, 0.0
    %v1628 = vadd.f32 %v1626, %v1627
    %v1629 = vsel %vm1621, %v1593, 0.0
    %v1630 = vadd.f32 %v1628, %v1629
    %v1631 = vsel %vm1621, %v1594, 0.0
    %v1632 = vadd.f32 %v1630, %v1631
    %v1633 = vsel %vm1621, %v1595, 0.0
    %v1634 = vadd.f32 %v1632, %v1633
    %v1635 = vsel %vm1621, %v1596, 0.0
    %v1636 = vadd.f32 %v1634, %v1635
    %v1637 = vsel %vm1621, %v1597, 0.0
    %v1638 = vadd.f32 %v1636, %v1637
    %v1639 = vsel %vm1621, %v1598, 0.0
    %v1640 = vadd.f32 %v1638, %v1639
    %v1641 = vsel %vm1621, %v1599, 0.0
    %v1642 = vadd.f32 %v1640, %v1641
    %v1643 = vsel %vm1621, %v1600, 0.0
    %v1644 = vadd.f32 %v1642, %v1643
    %v1645 = vsel %vm1621, %v1601, 0.0
    %v1646 = vadd.f32 %v1644, %v1645
    %v1647 = vsel %vm1621, %v1602, 0.0
    %v1648 = vadd.f32 %v1646, %v1647
    %v1649 = vsel %vm1621, %v1603, 0.0
    %v1650 = vadd.f32 %v1648, %v1649
    %v1651 = vsel %vm1621, %v1604, 0.0
    %v1652 = vadd.f32 %v1650, %v1651
    %v1653 = vsel %vm1621, %v1605, 0.0
    %v1654 = vadd.f32 %v1652, %v1653
    %v1655 = vsel %vm1621, %v1606, 0.0
    %v1656 = vadd.f32 %v1654, %v1655
    %v1657 = vsel %vm1621, %v1607, 0.0
    %v1658 = vadd.f32 %v1656, %v1657
    %v1659 = vsel %vm1621, %v1608, 0.0
    %v1660 = vadd.f32 %v1658, %v1659
    %v1661 = vsel %vm1621, %v1609, 0.0
    %v1662 = vadd.f32 %v1660, %v1661
    %v1663 = vsel %vm1621, %v1610, 0.0
    %v1664 = vadd.f32 %v1662, %v1663
    %v1665 = vsel %vm1621, %v1611, 0.0
    %v1666 = vadd.f32 %v1664, %v1665
    %v1667 = vsel %vm1621, %v1612, 0.0
    %v1668 = vadd.f32 %v1666, %v1667
    %v1669 = vsel %vm1621, %v1613, 0.0
    %v1670 = vadd.f32 %v1668, %v1669
    %v1671 = vsel %vm1621, %v1614, 0.0
    %v1672 = vadd.f32 %v1670, %v1671
    %v1673 = vsel %vm1621, %v1615, 0.0
    %v1674 = vadd.f32 %v1672, %v1673
    %v1675 = vsel %vm1621, %v1616, 0.0
    %v1676 = vadd.f32 %v1674, %v1675
    %v1677 = vsel %vm1621, %v1617, 0.0
    %v1678 = vadd.f32 %v1676, %v1677
    %v1679 = vsel %vm1621, %v1618, 0.0
    %v1680 = vadd.f32 %v1678, %v1679
    %v1681 = vsel %vm1621, %v1619, 0.0
    %v1682 = vadd.f32 %v1680, %v1681
    %v1683 = vsel %vm1621, %v1620, 0.0
    %v1684 = vadd.f32 %v1682, %v1683
    %v1685 = vrot.slane %v1684, 4
    %v1686 = vadd.f32 %v1684, %v1685
    %v1687 = vrot.slane %v1686, 2
    %v1688 = vadd.f32 %v1686, %v1687
    %v1689 = vrot.slane %v1688, 1
    %v1690 = vadd.f32 %v1688, %v1689
    %s1691 = sld [smem:[#allocation2]]
    %v1692 = vstv %s1691
    %v1693 = vadd.f32 %v1690, %v1692
    %vm1694 = vcmask 57344
    %1695 = vst.msk [vmem:[#allocation3] sm:$0x1] %vm1694, %v1693
    // Predicated region
    $region30: #{tpu_custom_call.1} parent=1 // pred_check
      _
    $region31: #{tpu_custom_call.1} parent=1 // pred_check_branch
      %1697 = sbr.rel (0) target = $region33
    $region32: #{tpu_custom_call.1} parent=1 // pred_region
      %s1699 = ssub.s32 16, 16
      %1700 = vsyncadd [#allocation4], %s1699
      %s1702 = sshll.u32 [#allocation3], 4
      %s1703 = int_to_ptr.vmem [resolvable:$true] %s1702
      %1705 = dma.vmem_to_hbm [thread:$0]  %s1703, 16, %s7, [#allocation4]
    $region33: #{tpu_custom_call.1} parent=1 // pred_fallthru
      _
    // Predicated region
    $region34: #{tpu_custom_call.1} parent=1 // pred_check
      _
    $region35: #{tpu_custom_call.1} parent=1 // pred_check_branch
      %1707 = sbr.rel (0) target = $region37
    $region36: #{tpu_custom_call.1} parent=1 // pred_region
      %1708 = dma.done [#allocation4], 16
    $region37: #{tpu_custom_call.1} parent=1 // pred_fallthru
      _
    %1709 = vsyncpa [#allocation4], 1

</llo_original>
